<compile_context>
chip_gen: v5e
topology: v5e:2x2
jax: 0.10.0
libtpu: 0.0.40
codegen_flags: <defaults>
</compile_context>

<pallas_src>
import functools
import math
import warnings

import jax
import jax.numpy as jnp
from jax.experimental import pallas as pl
from jax.experimental.pallas import tpu as pltpu

LN_EPS = 1e-5
_SQRT_HALF = 1.0 / math.sqrt(2.0)
_GELU_TANH_C = math.sqrt(2.0 / math.pi)


# ----------------------------------------------------------------------------
# feature probes / hardware info
# ----------------------------------------------------------------------------
def _probe_buffered():
    if not hasattr(pl, "Buffered"):
        return False
    try:
        pl.BlockSpec((8, 128), lambda i: (0, 0), pipeline_mode=pl.Buffered(1))
        return True
    except (TypeError, ValueError):
        return False


_HAS_BUFFERED = _probe_buffered()


def _physical_vmem_bytes():
    try:
        info = pltpu.get_tpu_info()
        v = getattr(info, "vmem_capacity_bytes", None)
        if v:
            return int(v)
    except Exception:
        pass
    return 64 << 20  # conservative: holds on every generation (v7x per-TC size)


def _default_max_block_b():
    try:
        kind = jax.devices()[0].device_kind.lower()
    except Exception:
        return 256
    if "v5e" in kind or "v5 lite" in kind or "v5lite" in kind:
        return 128  # 4x128 MXU, weaker ld/st: a 256-row f32 tile just spills
    return 256


# ----------------------------------------------------------------------------
# kernel
# ----------------------------------------------------------------------------
def _gelu_exact(x):
    # PyTorch nn.GELU() default: 0.5 * x * (1 + erf(x / sqrt(2))).
    return 0.5 * x * (1.0 + jax.lax.erf(x * _SQRT_HALF))


def _gelu_tanh(x):
    # tanh approximation -> EUP, keeps the VALU slot free (opt-in, deviates
    # slightly from torch exact GELU).
    return 0.5 * x * (1.0 + jnp.tanh(_GELU_TANH_C * (x + 0.044715 * x * x * x)))


def _layernorm(x, gamma, beta):
    # Single-pass variance (two independent row reductions).  max(var, 0)
    # guards the rare catastrophic-cancellation case vs. torch's two-pass form.
    mean = jnp.mean(x, axis=-1, keepdims=True)
    mean_sq = jnp.mean(x * x, axis=-1, keepdims=True)
    var = jnp.maximum(mean_sq - mean * mean, 0.0)
    inv = jax.lax.rsqrt(var + LN_EPS)
    return (x - mean) * inv * gamma + beta


def _linear(a, w_ref, bias):
    # Cast the activation to the weight dtype (f32 or bf16); accumulate in f32.
    w = w_ref[...]
    return jnp.dot(a.astype(w.dtype), w, preferred_element_type=jnp.float32) + bias


def _task_encoder_kernel(x_ref, w1_ref, vin_ref, w2_ref, vout_ref,
                         wa1_ref, ba1_ref, wa2_ref, o_ref, *, approx_gelu):
    x = x_ref[...].astype(jnp.float32)

    vin = vin_ref[...]                        # (3, Din): [b1; ln1_g; ln1_b]
    b1, g1, be1 = vin[0:1], vin[1:2], vin[2:3]
    vout = vout_ref[...]                      # (4, Dout): [b2; ln2_g; ln2_b; ba2]
    b2, g2, be2, ba2 = vout[0:1], vout[1:2], vout[2:3], vout[3:4]

    gelu = _gelu_tanh if approx_gelu else _gelu_exact

    # ---- encoder ----
    h = _linear(x, w1_ref, b1)
    h = _layernorm(h, g1, be1)
    h = gelu(h)
    # Dropout(0.2) -> identity in eval mode.
    e = _linear(h, w2_ref, b2)
    e = _layernorm(e, g2, be2)

    # ---- task_attention (hidden dim lane-padded to Hp; padding is exact-zero) ----
    a = gelu(_linear(e, wa1_ref, ba1_ref[...]))
    a = jax.nn.sigmoid(_linear(a, wa2_ref, ba2))

    # ---- gating ----
    o_ref[...] = (e * a).astype(o_ref.dtype)


# ----------------------------------------------------------------------------
# pallas_call builder
# ----------------------------------------------------------------------------
def _round_up(n, m):
    return ((n + m - 1) // m) * m


def _pick_block_b(batch, requested, max_block):
    bb = max_block if requested is None else requested
    bb = max(8, _round_up(min(bb, max_block), 8))
    if bb >= batch:
        # One full-batch tile: single grid step, block == full dim, no masking.
        return batch
    return bb


def _vmem_limit_bytes(block_b, din, dout, hp, weight_bytes, single_buffer):
    wbuf = 1 if single_buffer else 2
    w_bytes = weight_bytes * (din * din + din * dout + dout * hp + hp * dout)
    vec_bytes = 4 * (3 * din + 4 * dout + hp)
    io_bytes = 4 * 2 * block_b * (din + dout)                 # double-buffered x / out
    inter_bytes = 4 * block_b * (2 * din + 2 * dout + 2 * hp)  # h, e, a temporaries
    est = wbuf * (w_bytes + vec_bytes) + io_bytes + inter_bytes + (8 << 20)
    cap = max(16 << 20, (_physical_vmem_bytes() * 3) // 4)     # ~48 MiB v7x, ~96 MiB v5e/v6e
    return int(min(max(est, 16 << 20), cap))


@functools.lru_cache(maxsize=None)
def _build_call(batch, din, dout, hp, block_b, weight_bytes, single_buffer, approx_gelu):
    def const_spec(shape):
        idx = lambda i: (0, 0)
        if single_buffer:
            # Constant index_map -> one buffer suffices; halves weight VMEM.
            return pl.BlockSpec(shape, idx, pipeline_mode=pl.Buffered(1))
        return pl.BlockSpec(shape, idx)

    in_specs = [
        pl.BlockSpec((block_b, din), lambda i: (i, 0)),  # x
        const_spec((din, din)),                          # w1
        const_spec((3, din)),                            # [b1; ln1_g; ln1_b]
        const_spec((din, dout)),                         # w2
        const_spec((4, dout)),                           # [b2; ln2_g; ln2_b; ba2]
        const_spec((dout, hp)),                          # wa1 (lane-padded)
        const_spec((1, hp)),                             # ba1 (lane-padded)
        const_spec((hp, dout)),                          # wa2 (lane-padded)
    ]
    out_spec = pl.BlockSpec((block_b, dout), lambda i: (i, 0))

    return pl.pallas_call(
        functools.partial(_task_encoder_kernel, approx_gelu=approx_gelu),
        out_shape=jax.ShapeDtypeStruct((batch, dout), jnp.float32),
        grid_spec=pltpu.PrefetchScalarGridSpec(
            num_scalar_prefetch=0,
            grid=(pl.cdiv(batch, block_b),),
            in_specs=in_specs,
            out_specs=out_spec,
        ),
        compiler_params=pltpu.CompilerParams(
            dimension_semantics=("parallel",),
            vmem_limit_bytes=_vmem_limit_bytes(block_b, din, dout, hp,
                                               weight_bytes, single_buffer),
        ),
    )


# ----------------------------------------------------------------------------
# wrapper + parameter preparation
# ----------------------------------------------------------------------------
def prepare_params(params, *, use_bf16=False):
    """One-time layout prep: pack bias/LN vectors, lane-pad hidden_attn,
    optionally cast the four weight matrices to bf16 (MXU-native rate)."""
    din = params["w1"].shape[0]
    dout = params["w2"].shape[1]
    h = params["wa1"].shape[1]
    hp = max(128, _round_up(h, 128))
    wdt = jnp.bfloat16 if use_bf16 else jnp.float32

    wa1 = jnp.pad(params["wa1"], ((0, 0), (0, hp - h)))
    wa2 = jnp.pad(params["wa2"], ((0, hp - h), (0, 0)))
    ba1 = jnp.pad(params["ba1"], ((0, 0), (0, hp - h)))

    vin = jnp.concatenate(
        [params["b1"], params["ln1_g"], params["ln1_b"]], axis=0)              # (3, Din)
    vout = jnp.concatenate(
        [params["b2"], params["ln2_g"], params["ln2_b"], params["ba2"]], axis=0)  # (4, Dout)

    return {
        "w1": params["w1"].astype(wdt),
        "w2": params["w2"].astype(wdt),
        "wa1": wa1.astype(wdt),
        "wa2": wa2.astype(wdt),
        "vin": vin.astype(jnp.float32),
        "vout": vout.astype(jnp.float32),
        "ba1": ba1.astype(jnp.float32),
    }


def task_specific_encoder(x, prepared, *, block_b=None, approx_gelu=False):
    """x: [B, input_dim] float32 -> [B, output_dim] float32 (eval mode)."""
    B, din = x.shape
    dout = prepared["w2"].shape[1]
    hp = prepared["wa1"].shape[1]
    wbytes = jnp.dtype(prepared["w1"].dtype).itemsize

    bb = _pick_block_b(B, block_b, _default_max_block_b())

    args = (x, prepared["w1"], prepared["vin"], prepared["w2"], prepared["vout"],
            prepared["wa1"], prepared["ba1"], prepared["wa2"])

    if _HAS_BUFFERED:
        try:
            return _build_call(B, din, dout, hp, bb, wbytes, True, approx_gelu)(*args)
        except Exception as err:
            # Only the optional single-buffer feature gets a fallback; the
            # double-buffered retry below is NOT wrapped, so genuine errors
            # (e.g. a real VMEM overflow) still surface there.
            warnings.warn(
                "single-buffered weight path (pipeline_mode=pl.Buffered(1)) failed "
                f"with {type(err).__name__}: {err}; retrying with default "
                "double-buffered weight blocks")
    return _build_call(B, din, dout, hp, bb, wbytes, False, approx_gelu)(*args)


# ----------------------------------------------------------------------------
# synthetic parameters + pure-JAX reference
# ----------------------------------------------------------------------------
def init_params(key, input_dim, output_dim):
    """Deterministic synthetic parameters (same shapes as the PyTorch module)."""
    hidden_attn = output_dim // 4
    ks = jax.random.split(key, 4)

    def lin(k, fan_in, fan_out):
        kw, kb = jax.random.split(k)
        bound = 1.0 / math.sqrt(fan_in)
        w = jax.random.uniform(kw, (fan_in, fan_out), jnp.float32, -bound, bound)
        b = jax.random.uniform(kb, (1, fan_out), jnp.float32, -bound, bound)
        return w, b

    w1, b1 = lin(ks[0], input_dim, input_dim)
    w2, b2 = lin(ks[1], input_dim, output_dim)
    wa1, ba1 = lin(ks[2], output_dim, hidden_attn)
    wa2, ba2 = lin(ks[3], hidden_attn, output_dim)

    return {
        "w1": w1, "b1": b1,
        "ln1_g": jnp.ones((1, input_dim), jnp.float32),
        "ln1_b": jnp.zeros((1, input_dim), jnp.float32),
        "w2": w2, "b2": b2,
        "ln2_g": jnp.ones((1, output_dim), jnp.float32),
        "ln2_b": jnp.zeros((1, output_dim), jnp.float32),
        "wa1": wa1, "ba1": ba1,
        "wa2": wa2, "ba2": ba2,
    }


def _reference(x, p):
    def ln(h, g, b):
        m = jnp.mean(h, -1, keepdims=True)
        v = jnp.mean((h - m) ** 2, -1, keepdims=True)
        return (h - m) / jnp.sqrt(v + LN_EPS) * g + b

    h = x @ p["w1"] + p["b1"]
    h = ln(h, p["ln1_g"], p["ln1_b"])
    h = jax.nn.gelu(h, approximate=False)
    e = h @ p["w2"] + p["b2"]
    e = ln(e, p["ln2_g"], p["ln2_b"])
    a = jax.nn.gelu(e @ p["wa1"] + p["ba1"], approximate=False)
    a = jax.nn.sigmoid(a @ p["wa2"] + p["ba2"])
    return e * a


if __name__ == "__main__":
    key = jax.random.PRNGKey(0)
    k_x, k_p, k_x2 = jax.random.split(key, 3)

    # Lane-dense dims; hidden_attn = output_dim // 4 = 32 (lane-padded to 128
    # inside prepare_params).
    input_dim, output_dim = 256, 128
    params = init_params(k_p, input_dim, output_dim)

    # 1) Default exact-f32 path, small batch -> single grid step, no wrapper
    #    pad/slice.  Strict check against the torch-semantics reference.
    batch = 20
    x = jax.random.normal(k_x, (batch, input_dim), jnp.float32)
    prep = prepare_params(params)
    out = jax.block_until_ready(task_specific_encoder(x, prep))
    ref = _reference(x, params)
    assert out.shape == (batch, output_dim)
    max_err = float(jnp.max(jnp.abs(out - ref)))
    assert max_err < 1e-4, max_err

    # 2) bf16-weight MXU path + tanh-GELU, batch > block_b -> multi-step grid
    #    with a Pallas-masked boundary block.  Loose sanity tolerances (bf16
    #    rounding + tanh approximation); strict numerics are covered by (1).
    batch2 = 300
    x2 = jax.random.normal(k_x2, (batch2, input_dim), jnp.float32)
    prep16 = prepare_params(params, use_bf16=True)
    out2 = jax.block_until_ready(
        task_specific_encoder(x2, prep16, approx_gelu=True))
    ref2 = _reference(x2, params)
    assert out2.shape == (batch2, output_dim)
    abs_err2 = jnp.abs(out2 - ref2)
    assert float(jnp.max(abs_err2)) < 2.5e-1, float(jnp.max(abs_err2))
    assert float(jnp.mean(abs_err2)) < 2e-2, float(jnp.mean(abs_err2))

    print("KERNEL_OK")
</pallas_src>

<mosaic_0001>
module attributes {stable_mosaic.version = 11 : i64} {
  func.func @_task_encoder_kernel(%arg0: i32, %arg1: memref<20x256xf32, #tpu.memory_space<vmem>>, %arg2: memref<256x256xf32, #tpu.memory_space<vmem>>, %arg3: memref<3x256xf32, #tpu.memory_space<vmem>>, %arg4: memref<256x128xf32, #tpu.memory_space<vmem>>, %arg5: memref<4x128xf32, #tpu.memory_space<vmem>>, %arg6: memref<128x128xf32, #tpu.memory_space<vmem>>, %arg7: memref<1x128xf32, #tpu.memory_space<vmem>>, %arg8: memref<128x128xf32, #tpu.memory_space<vmem>>, %arg9: memref<20x128xf32, #tpu.memory_space<vmem>>) attributes {dimension_semantics = [#tpu.dimension_semantics<parallel>], iteration_bounds = array<i64: 1>, scalar_prefetch = 0 : i64, scratch_operands = 0 : i64, tpu.core_type = #tpu.core_type<tc>, window_params = [{transform_indices = @transform_0, window_bounds = array<i64: 20, 256>}, {pipeline_mode = #tpu.pipeline_mode<synchronous>, transform_indices = @transform_1, window_bounds = array<i64: 256, 256>}, {pipeline_mode = #tpu.pipeline_mode<synchronous>, transform_indices = @transform_2, window_bounds = array<i64: 3, 256>}, {pipeline_mode = #tpu.pipeline_mode<synchronous>, transform_indices = @transform_3, window_bounds = array<i64: 256, 128>}, {pipeline_mode = #tpu.pipeline_mode<synchronous>, transform_indices = @transform_4, window_bounds = array<i64: 4, 128>}, {pipeline_mode = #tpu.pipeline_mode<synchronous>, transform_indices = @transform_5, window_bounds = array<i64: 128, 128>}, {pipeline_mode = #tpu.pipeline_mode<synchronous>, transform_indices = @transform_6, window_bounds = array<i64: 1, 128>}, {pipeline_mode = #tpu.pipeline_mode<synchronous>, transform_indices = @transform_7, window_bounds = array<i64: 128, 128>}, {transform_indices = @transform_8, window_bounds = array<i64: 20, 128>}]} {
    %c0 = arith.constant 0 : index
    %c0_0 = arith.constant 0 : index
    %0 = vector.load %arg1[%c0, %c0_0] : memref<20x256xf32, #tpu.memory_space<vmem>>, vector<20x256xf32>
    %c0_1 = arith.constant 0 : index
    %c0_2 = arith.constant 0 : index
    %1 = vector.load %arg3[%c0_1, %c0_2] : memref<3x256xf32, #tpu.memory_space<vmem>>, vector<3x256xf32>
    %2 = vector.extract_strided_slice %1 {offsets = [0, 0], sizes = [1, 256], strides = [1, 1]} : vector<3x256xf32> to vector<1x256xf32>
    %3 = vector.extract_strided_slice %1 {offsets = [1, 0], sizes = [1, 256], strides = [1, 1]} : vector<3x256xf32> to vector<1x256xf32>
    %4 = vector.extract_strided_slice %1 {offsets = [2, 0], sizes = [1, 256], strides = [1, 1]} : vector<3x256xf32> to vector<1x256xf32>
    %c0_3 = arith.constant 0 : index
    %c0_4 = arith.constant 0 : index
    %5 = vector.load %arg5[%c0_3, %c0_4] : memref<4x128xf32, #tpu.memory_space<vmem>>, vector<4x128xf32>
    %6 = vector.extract_strided_slice %5 {offsets = [0, 0], sizes = [1, 128], strides = [1, 1]} : vector<4x128xf32> to vector<1x128xf32>
    %7 = vector.extract_strided_slice %5 {offsets = [1, 0], sizes = [1, 128], strides = [1, 1]} : vector<4x128xf32> to vector<1x128xf32>
    %8 = vector.extract_strided_slice %5 {offsets = [2, 0], sizes = [1, 128], strides = [1, 1]} : vector<4x128xf32> to vector<1x128xf32>
    %9 = vector.extract_strided_slice %5 {offsets = [3, 0], sizes = [1, 128], strides = [1, 1]} : vector<4x128xf32> to vector<1x128xf32>
    %c0_5 = arith.constant 0 : index
    %c0_6 = arith.constant 0 : index
    %10 = vector.load %arg2[%c0_5, %c0_6] : memref<256x256xf32, #tpu.memory_space<vmem>>, vector<256x256xf32>
    %cst = arith.constant dense<0.000000e+00> : vector<20x256xf32>
    %11 = tpu.matmul %0, %10, %cst {dimension_numbers = #tpu.dot_dimension_numbers<[1], [0], [0], [1], [0, 0, 1, 1], [], []>} : vector<20x256xf32>, vector<256x256xf32>, vector<20x256xf32> -> vector<20x256xf32>
    %12 = vector.broadcast %2 : vector<1x256xf32> to vector<20x256xf32>
    %13 = arith.addf %11, %12 : vector<20x256xf32>
    %cst_7 = arith.constant dense<0.000000e+00> : vector<20xf32>
    %14 = vector.multi_reduction <add>, %13, %cst_7 [1] : vector<20x256xf32> to vector<20xf32>
    %15 = vector.shape_cast %14 : vector<20xf32> to vector<20x1xf32>
    %cst_8 = arith.constant 2.560000e+02 : f32
    %16 = vector.broadcast %cst_8 : f32 to vector<20x1xf32>
    %17 = arith.divf %15, %16 : vector<20x1xf32>
    %18 = arith.mulf %13, %13 : vector<20x256xf32>
    %cst_9 = arith.constant dense<0.000000e+00> : vector<20xf32>
    %19 = vector.multi_reduction <add>, %18, %cst_9 [1] : vector<20x256xf32> to vector<20xf32>
    %20 = vector.shape_cast %19 : vector<20xf32> to vector<20x1xf32>
    %cst_10 = arith.constant 2.560000e+02 : f32
    %21 = vector.broadcast %cst_10 : f32 to vector<20x1xf32>
    %22 = arith.divf %20, %21 : vector<20x1xf32>
    %23 = arith.mulf %17, %17 : vector<20x1xf32>
    %24 = arith.subf %22, %23 : vector<20x1xf32>
    %cst_11 = arith.constant 0.000000e+00 : f32
    %25 = vector.broadcast %cst_11 : f32 to vector<20x1xf32>
    %26 = arith.maximumf %24, %25 : vector<20x1xf32>
    %cst_12 = arith.constant 9.99999974E-6 : f32
    %27 = vector.broadcast %cst_12 : f32 to vector<20x1xf32>
    %28 = arith.addf %26, %27 : vector<20x1xf32>
    %29 = math.rsqrt %28 : vector<20x1xf32>
    %30 = vector.broadcast %17 : vector<20x1xf32> to vector<20x256xf32>
    %31 = arith.subf %13, %30 : vector<20x256xf32>
    %32 = vector.broadcast %29 : vector<20x1xf32> to vector<20x256xf32>
    %33 = arith.mulf %31, %32 : vector<20x256xf32>
    %34 = vector.broadcast %3 : vector<1x256xf32> to vector<20x256xf32>
    %35 = arith.mulf %33, %34 : vector<20x256xf32>
    %36 = vector.broadcast %4 : vector<1x256xf32> to vector<20x256xf32>
    %37 = arith.addf %35, %36 : vector<20x256xf32>
    %cst_13 = arith.constant 5.000000e-01 : f32
    %38 = vector.broadcast %cst_13 : f32 to vector<20x256xf32>
    %39 = arith.mulf %38, %37 : vector<20x256xf32>
    %cst_14 = arith.constant 0.707106769 : f32
    %40 = vector.broadcast %cst_14 : f32 to vector<20x256xf32>
    %41 = arith.mulf %37, %40 : vector<20x256xf32>
    %42 = math.erf %41 : vector<20x256xf32>
    %cst_15 = arith.constant 1.000000e+00 : f32
    %43 = vector.broadcast %cst_15 : f32 to vector<20x256xf32>
    %44 = arith.addf %43, %42 : vector<20x256xf32>
    %45 = arith.mulf %39, %44 : vector<20x256xf32>
    %c0_16 = arith.constant 0 : index
    %c0_17 = arith.constant 0 : index
    %46 = vector.load %arg4[%c0_16, %c0_17] : memref<256x128xf32, #tpu.memory_space<vmem>>, vector<256x128xf32>
    %cst_18 = arith.constant dense<0.000000e+00> : vector<20x128xf32>
    %47 = tpu.matmul %45, %46, %cst_18 {dimension_numbers = #tpu.dot_dimension_numbers<[1], [0], [0], [1], [0, 0, 1, 1], [], []>} : vector<20x256xf32>, vector<256x128xf32>, vector<20x128xf32> -> vector<20x128xf32>
    %48 = vector.broadcast %6 : vector<1x128xf32> to vector<20x128xf32>
    %49 = arith.addf %47, %48 : vector<20x128xf32>
    %cst_19 = arith.constant dense<0.000000e+00> : vector<20xf32>
    %50 = vector.multi_reduction <add>, %49, %cst_19 [1] : vector<20x128xf32> to vector<20xf32>
    %51 = vector.shape_cast %50 : vector<20xf32> to vector<20x1xf32>
    %cst_20 = arith.constant 1.280000e+02 : f32
    %52 = vector.broadcast %cst_20 : f32 to vector<20x1xf32>
    %53 = arith.divf %51, %52 : vector<20x1xf32>
    %54 = arith.mulf %49, %49 : vector<20x128xf32>
    %cst_21 = arith.constant dense<0.000000e+00> : vector<20xf32>
    %55 = vector.multi_reduction <add>, %54, %cst_21 [1] : vector<20x128xf32> to vector<20xf32>
    %56 = vector.shape_cast %55 : vector<20xf32> to vector<20x1xf32>
    %cst_22 = arith.constant 1.280000e+02 : f32
    %57 = vector.broadcast %cst_22 : f32 to vector<20x1xf32>
    %58 = arith.divf %56, %57 : vector<20x1xf32>
    %59 = arith.mulf %53, %53 : vector<20x1xf32>
    %60 = arith.subf %58, %59 : vector<20x1xf32>
    %cst_23 = arith.constant 0.000000e+00 : f32
    %61 = vector.broadcast %cst_23 : f32 to vector<20x1xf32>
    %62 = arith.maximumf %60, %61 : vector<20x1xf32>
    %cst_24 = arith.constant 9.99999974E-6 : f32
    %63 = vector.broadcast %cst_24 : f32 to vector<20x1xf32>
    %64 = arith.addf %62, %63 : vector<20x1xf32>
    %65 = math.rsqrt %64 : vector<20x1xf32>
    %66 = vector.broadcast %53 : vector<20x1xf32> to vector<20x128xf32>
    %67 = arith.subf %49, %66 : vector<20x128xf32>
    %68 = vector.broadcast %65 : vector<20x1xf32> to vector<20x128xf32>
    %69 = arith.mulf %67, %68 : vector<20x128xf32>
    %70 = vector.broadcast %7 : vector<1x128xf32> to vector<20x128xf32>
    %71 = arith.mulf %69, %70 : vector<20x128xf32>
    %72 = vector.broadcast %8 : vector<1x128xf32> to vector<20x128xf32>
    %73 = arith.addf %71, %72 : vector<20x128xf32>
    %c0_25 = arith.constant 0 : index
    %c0_26 = arith.constant 0 : index
    %74 = vector.load %arg7[%c0_25, %c0_26] : memref<1x128xf32, #tpu.memory_space<vmem>>, vector<1x128xf32>
    %c0_27 = arith.constant 0 : index
    %c0_28 = arith.constant 0 : index
    %75 = vector.load %arg6[%c0_27, %c0_28] : memref<128x128xf32, #tpu.memory_space<vmem>>, vector<128x128xf32>
    %cst_29 = arith.constant dense<0.000000e+00> : vector<20x128xf32>
    %76 = tpu.matmul %73, %75, %cst_29 {dimension_numbers = #tpu.dot_dimension_numbers<[1], [0], [0], [1], [0, 0, 1, 1], [], []>} : vector<20x128xf32>, vector<128x128xf32>, vector<20x128xf32> -> vector<20x128xf32>
    %77 = vector.broadcast %74 : vector<1x128xf32> to vector<20x128xf32>
    %78 = arith.addf %76, %77 : vector<20x128xf32>
    %cst_30 = arith.constant 5.000000e-01 : f32
    %79 = vector.broadcast %cst_30 : f32 to vector<20x128xf32>
    %80 = arith.mulf %79, %78 : vector<20x128xf32>
    %cst_31 = arith.constant 0.707106769 : f32
    %81 = vector.broadcast %cst_31 : f32 to vector<20x128xf32>
    %82 = arith.mulf %78, %81 : vector<20x128xf32>
    %83 = math.erf %82 : vector<20x128xf32>
    %cst_32 = arith.constant 1.000000e+00 : f32
    %84 = vector.broadcast %cst_32 : f32 to vector<20x128xf32>
    %85 = arith.addf %84, %83 : vector<20x128xf32>
    %86 = arith.mulf %80, %85 : vector<20x128xf32>
    %c0_33 = arith.constant 0 : index
    %c0_34 = arith.constant 0 : index
    %87 = vector.load %arg8[%c0_33, %c0_34] : memref<128x128xf32, #tpu.memory_space<vmem>>, vector<128x128xf32>
    %cst_35 = arith.constant dense<0.000000e+00> : vector<20x128xf32>
    %88 = tpu.matmul %86, %87, %cst_35 {dimension_numbers = #tpu.dot_dimension_numbers<[1], [0], [0], [1], [0, 0, 1, 1], [], []>} : vector<20x128xf32>, vector<128x128xf32>, vector<20x128xf32> -> vector<20x128xf32>
    %89 = vector.broadcast %9 : vector<1x128xf32> to vector<20x128xf32>
    %90 = arith.addf %88, %89 : vector<20x128xf32>
    %91 = arith.negf %90 : vector<20x128xf32>
    %92 = math.exp %91 : vector<20x128xf32>
    %cst_36 = arith.constant 1.000000e+00 : f32
    %93 = vector.broadcast %cst_36 : f32 to vector<20x128xf32>
    %94 = arith.addf %93, %92 : vector<20x128xf32>
    %95 = arith.divf %93, %94 : vector<20x128xf32>
    %96 = arith.mulf %73, %95 : vector<20x128xf32>
    %c0_37 = arith.constant 0 : index
    %c0_38 = arith.constant 0 : index
    %97 = vector.load %arg9[%c0_37, %c0_38] : memref<20x128xf32, #tpu.memory_space<vmem>>, vector<20x128xf32>
    tpu.vector_store %arg9[%c0_37, %c0_38], %96 {strides = array<i32>} : memref<20x128xf32, #tpu.memory_space<vmem>>, vector<20x128xf32>,
    return
  }
  func.func @transform_0(%arg0: i32) -> (i32, i32) {
    %c0_i32 = arith.constant 0 : i32
    %c0_i32_0 = arith.constant 0 : i32
    return %arg0, %c0_i32 : i32, i32
  }
  func.func @transform_1(%arg0: i32) -> (i32, i32) {
    %c0_i32 = arith.constant 0 : i32
    %c0_i32_0 = arith.constant 0 : i32
    %c0_i32_1 = arith.constant 0 : i32
    return %c0_i32, %c0_i32_0 : i32, i32
  }
  func.func @transform_2(%arg0: i32) -> (i32, i32) {
    %c0_i32 = arith.constant 0 : i32
    %c0_i32_0 = arith.constant 0 : i32
    %c0_i32_1 = arith.constant 0 : i32
    return %c0_i32, %c0_i32_0 : i32, i32
  }
  func.func @transform_3(%arg0: i32) -> (i32, i32) {
    %c0_i32 = arith.constant 0 : i32
    %c0_i32_0 = arith.constant 0 : i32
    %c0_i32_1 = arith.constant 0 : i32
    return %c0_i32, %c0_i32_0 : i32, i32
  }
  func.func @transform_4(%arg0: i32) -> (i32, i32) {
    %c0_i32 = arith.constant 0 : i32
    %c0_i32_0 = arith.constant 0 : i32
    %c0_i32_1 = arith.constant 0 : i32
    return %c0_i32, %c0_i32_0 : i32, i32
  }
  func.func @transform_5(%arg0: i32) -> (i32, i32) {
    %c0_i32 = arith.constant 0 : i32
    %c0_i32_0 = arith.constant 0 : i32
    %c0_i32_1 = arith.constant 0 : i32
    return %c0_i32, %c0_i32_0 : i32, i32
  }
  func.func @transform_6(%arg0: i32) -> (i32, i32) {
    %c0_i32 = arith.constant 0 : i32
    %c0_i32_0 = arith.constant 0 : i32
    %c0_i32_1 = arith.constant 0 : i32
    return %c0_i32, %c0_i32_0 : i32, i32
  }
  func.func @transform_7(%arg0: i32) -> (i32, i32) {
    %c0_i32 = arith.constant 0 : i32
    %c0_i32_0 = arith.constant 0 : i32
    %c0_i32_1 = arith.constant 0 : i32
    return %c0_i32, %c0_i32_0 : i32, i32
  }
  func.func @transform_8(%arg0: i32) -> (i32, i32) {
    %c0_i32 = arith.constant 0 : i32
    %c0_i32_0 = arith.constant 0 : i32
    return %arg0, %c0_i32 : i32, i32
  }
}

module attributes {stable_mosaic.version = 11 : i64} {
  func.func @_task_encoder_kernel(%arg0: i32, %arg1: memref<20x256xf32, #tpu.memory_space<vmem>>, %arg2: memref<256x256xf32, #tpu.memory_space<vmem>>, %arg3: memref<3x256xf32, #tpu.memory_space<vmem>>, %arg4: memref<256x128xf32, #tpu.memory_space<vmem>>, %arg5: memref<4x128xf32, #tpu.memory_space<vmem>>, %arg6: memref<128x128xf32, #tpu.memory_space<vmem>>, %arg7: memref<1x128xf32, #tpu.memory_space<vmem>>, %arg8: memref<128x128xf32, #tpu.memory_space<vmem>>, %arg9: memref<20x128xf32, #tpu.memory_space<vmem>>) attributes {dimension_semantics = [#tpu.dimension_semantics<parallel>], iteration_bounds = array<i64: 1>, scalar_prefetch = 0 : i64, scratch_operands = 0 : i64, tpu.core_type = #tpu.core_type<tc>, window_params = [{transform_indices = @transform_0, window_bounds = array<i64: 20, 256>}, {pipeline_mode = #tpu.pipeline_mode<synchronous>, transform_indices = @transform_1, window_bounds = array<i64: 256, 256>}, {pipeline_mode = #tpu.pipeline_mode<synchronous>, transform_indices = @transform_2, window_bounds = array<i64: 3, 256>}, {pipeline_mode = #tpu.pipeline_mode<synchronous>, transform_indices = @transform_3, window_bounds = array<i64: 256, 128>}, {pipeline_mode = #tpu.pipeline_mode<synchronous>, transform_indices = @transform_4, window_bounds = array<i64: 4, 128>}, {pipeline_mode = #tpu.pipeline_mode<synchronous>, transform_indices = @transform_5, window_bounds = array<i64: 128, 128>}, {pipeline_mode = #tpu.pipeline_mode<synchronous>, transform_indices = @transform_6, window_bounds = array<i64: 1, 128>}, {pipeline_mode = #tpu.pipeline_mode<synchronous>, transform_indices = @transform_7, window_bounds = array<i64: 128, 128>}, {transform_indices = @transform_8, window_bounds = array<i64: 20, 128>}]} {
    %c0 = arith.constant 0 : index
    %c0_0 = arith.constant 0 : index
    %0 = vector.load %arg1[%c0, %c0_0] : memref<20x256xf32, #tpu.memory_space<vmem>>, vector<20x256xf32>
    %c0_1 = arith.constant 0 : index
    %c0_2 = arith.constant 0 : index
    %1 = vector.load %arg3[%c0_1, %c0_2] : memref<3x256xf32, #tpu.memory_space<vmem>>, vector<3x256xf32>
    %2 = vector.extract_strided_slice %1 {offsets = [0, 0], sizes = [1, 256], strides = [1, 1]} : vector<3x256xf32> to vector<1x256xf32>
    %3 = vector.extract_strided_slice %1 {offsets = [1, 0], sizes = [1, 256], strides = [1, 1]} : vector<3x256xf32> to vector<1x256xf32>
    %4 = vector.extract_strided_slice %1 {offsets = [2, 0], sizes = [1, 256], strides = [1, 1]} : vector<3x256xf32> to vector<1x256xf32>
    %c0_3 = arith.constant 0 : index
    %c0_4 = arith.constant 0 : index
    %5 = vector.load %arg5[%c0_3, %c0_4] : memref<4x128xf32, #tpu.memory_space<vmem>>, vector<4x128xf32>
    %6 = vector.extract_strided_slice %5 {offsets = [0, 0], sizes = [1, 128], strides = [1, 1]} : vector<4x128xf32> to vector<1x128xf32>
    %7 = vector.extract_strided_slice %5 {offsets = [1, 0], sizes = [1, 128], strides = [1, 1]} : vector<4x128xf32> to vector<1x128xf32>
    %8 = vector.extract_strided_slice %5 {offsets = [2, 0], sizes = [1, 128], strides = [1, 1]} : vector<4x128xf32> to vector<1x128xf32>
    %9 = vector.extract_strided_slice %5 {offsets = [3, 0], sizes = [1, 128], strides = [1, 1]} : vector<4x128xf32> to vector<1x128xf32>
    %c0_5 = arith.constant 0 : index
    %c0_6 = arith.constant 0 : index
    %10 = vector.load %arg2[%c0_5, %c0_6] : memref<256x256xf32, #tpu.memory_space<vmem>>, vector<256x256xf32>
    %cst = arith.constant dense<0.000000e+00> : vector<20x256xf32>
    %11 = tpu.matmul %0, %10, %cst {dimension_numbers = #tpu.dot_dimension_numbers<[1], [0], [0], [1], [0, 0, 1, 1], [], []>} : vector<20x256xf32>, vector<256x256xf32>, vector<20x256xf32> -> vector<20x256xf32>
    %12 = vector.broadcast %2 : vector<1x256xf32> to vector<20x256xf32>
    %13 = arith.addf %11, %12 : vector<20x256xf32>
    %cst_7 = arith.constant dense<0.000000e+00> : vector<20xf32>
    %14 = vector.multi_reduction <add>, %13, %cst_7 [1] : vector<20x256xf32> to vector<20xf32>
    %15 = vector.shape_cast %14 : vector<20xf32> to vector<20x1xf32>
    %cst_8 = arith.constant 2.560000e+02 : f32
    %16 = vector.broadcast %cst_8 : f32 to vector<20x1xf32>
    %17 = arith.divf %15, %16 : vector<20x1xf32>
    %18 = arith.mulf %13, %13 : vector<20x256xf32>
    %cst_9 = arith.constant dense<0.000000e+00> : vector<20xf32>
    %19 = vector.multi_reduction <add>, %18, %cst_9 [1] : vector<20x256xf32> to vector<20xf32>
    %20 = vector.shape_cast %19 : vector<20xf32> to vector<20x1xf32>
    %cst_10 = arith.constant 2.560000e+02 : f32
    %21 = vector.broadcast %cst_10 : f32 to vector<20x1xf32>
    %22 = arith.divf %20, %21 : vector<20x1xf32>
    %23 = arith.mulf %17, %17 : vector<20x1xf32>
    %24 = arith.subf %22, %23 : vector<20x1xf32>
    %cst_11 = arith.constant 0.000000e+00 : f32
    %25 = vector.broadcast %cst_11 : f32 to vector<20x1xf32>
    %26 = arith.maximumf %24, %25 : vector<20x1xf32>
    %cst_12 = arith.constant 9.99999974E-6 : f32
    %27 = vector.broadcast %cst_12 : f32 to vector<20x1xf32>
    %28 = arith.addf %26, %27 : vector<20x1xf32>
    %29 = math.rsqrt %28 : vector<20x1xf32>
    %30 = vector.broadcast %17 : vector<20x1xf32> to vector<20x256xf32>
    %31 = arith.subf %13, %30 : vector<20x256xf32>
    %32 = vector.broadcast %29 : vector<20x1xf32> to vector<20x256xf32>
    %33 = arith.mulf %31, %32 : vector<20x256xf32>
    %34 = vector.broadcast %3 : vector<1x256xf32> to vector<20x256xf32>
    %35 = arith.mulf %33, %34 : vector<20x256xf32>
    %36 = vector.broadcast %4 : vector<1x256xf32> to vector<20x256xf32>
    %37 = arith.addf %35, %36 : vector<20x256xf32>
    %cst_13 = arith.constant 5.000000e-01 : f32
    %38 = vector.broadcast %cst_13 : f32 to vector<20x256xf32>
    %39 = arith.mulf %38, %37 : vector<20x256xf32>
    %cst_14 = arith.constant 0.707106769 : f32
    %40 = vector.broadcast %cst_14 : f32 to vector<20x256xf32>
    %41 = arith.mulf %37, %40 : vector<20x256xf32>
    %42 = math.erf %41 : vector<20x256xf32>
    %cst_15 = arith.constant 1.000000e+00 : f32
    %43 = vector.broadcast %cst_15 : f32 to vector<20x256xf32>
    %44 = arith.addf %43, %42 : vector<20x256xf32>
    %45 = arith.mulf %39, %44 : vector<20x256xf32>
    %c0_16 = arith.constant 0 : index
    %c0_17 = arith.constant 0 : index
    %46 = vector.load %arg4[%c0_16, %c0_17] : memref<256x128xf32, #tpu.memory_space<vmem>>, vector<256x128xf32>
    %cst_18 = arith.constant dense<0.000000e+00> : vector<20x128xf32>
    %47 = tpu.matmul %45, %46, %cst_18 {dimension_numbers = #tpu.dot_dimension_numbers<[1], [0], [0], [1], [0, 0, 1, 1], [], []>} : vector<20x256xf32>, vector<256x128xf32>, vector<20x128xf32> -> vector<20x128xf32>
    %48 = vector.broadcast %6 : vector<1x128xf32> to vector<20x128xf32>
    %49 = arith.addf %47, %48 : vector<20x128xf32>
    %cst_19 = arith.constant dense<0.000000e+00> : vector<20xf32>
    %50 = vector.multi_reduction <add>, %49, %cst_19 [1] : vector<20x128xf32> to vector<20xf32>
    %51 = vector.shape_cast %50 : vector<20xf32> to vector<20x1xf32>
    %cst_20 = arith.constant 1.280000e+02 : f32
    %52 = vector.broadcast %cst_20 : f32 to vector<20x1xf32>
    %53 = arith.divf %51, %52 : vector<20x1xf32>
    %54 = arith.mulf %49, %49 : vector<20x128xf32>
    %cst_21 = arith.constant dense<0.000000e+00> : vector<20xf32>
    %55 = vector.multi_reduction <add>, %54, %cst_21 [1] : vector<20x128xf32> to vector<20xf32>
    %56 = vector.shape_cast %55 : vector<20xf32> to vector<20x1xf32>
    %cst_22 = arith.constant 1.280000e+02 : f32
    %57 = vector.broadcast %cst_22 : f32 to vector<20x1xf32>
    %58 = arith.divf %56, %57 : vector<20x1xf32>
    %59 = arith.mulf %53, %53 : vector<20x1xf32>
    %60 = arith.subf %58, %59 : vector<20x1xf32>
    %cst_23 = arith.constant 0.000000e+00 : f32
    %61 = vector.broadcast %cst_23 : f32 to vector<20x1xf32>
    %62 = arith.maximumf %60, %61 : vector<20x1xf32>
    %cst_24 = arith.constant 9.99999974E-6 : f32
    %63 = vector.broadcast %cst_24 : f32 to vector<20x1xf32>
    %64 = arith.addf %62, %63 : vector<20x1xf32>
    %65 = math.rsqrt %64 : vector<20x1xf32>
    %66 = vector.broadcast %53 : vector<20x1xf32> to vector<20x128xf32>
    %67 = arith.subf %49, %66 : vector<20x128xf32>
    %68 = vector.broadcast %65 : vector<20x1xf32> to vector<20x128xf32>
    %69 = arith.mulf %67, %68 : vector<20x128xf32>
    %70 = vector.broadcast %7 : vector<1x128xf32> to vector<20x128xf32>
    %71 = arith.mulf %69, %70 : vector<20x128xf32>
    %72 = vector.broadcast %8 : vector<1x128xf32> to vector<20x128xf32>
    %73 = arith.addf %71, %72 : vector<20x128xf32>
    %c0_25 = arith.constant 0 : index
    %c0_26 = arith.constant 0 : index
    %74 = vector.load %arg7[%c0_25, %c0_26] : memref<1x128xf32, #tpu.memory_space<vmem>>, vector<1x128xf32>
    %c0_27 = arith.constant 0 : index
    %c0_28 = arith.constant 0 : index
    %75 = vector.load %arg6[%c0_27, %c0_28] : memref<128x128xf32, #tpu.memory_space<vmem>>, vector<128x128xf32>
    %cst_29 = arith.constant dense<0.000000e+00> : vector<20x128xf32>
    %76 = tpu.matmul %73, %75, %cst_29 {dimension_numbers = #tpu.dot_dimension_numbers<[1], [0], [0], [1], [0, 0, 1, 1], [], []>} : vector<20x128xf32>, vector<128x128xf32>, vector<20x128xf32> -> vector<20x128xf32>
    %77 = vector.broadcast %74 : vector<1x128xf32> to vector<20x128xf32>
    %78 = arith.addf %76, %77 : vector<20x128xf32>
    %cst_30 = arith.constant 5.000000e-01 : f32
    %79 = vector.broadcast %cst_30 : f32 to vector<20x128xf32>
    %80 = arith.mulf %79, %78 : vector<20x128xf32>
    %cst_31 = arith.constant 0.707106769 : f32
    %81 = vector.broadcast %cst_31 : f32 to vector<20x128xf32>
    %82 = arith.mulf %78, %81 : vector<20x128xf32>
    %83 = math.erf %82 : vector<20x128xf32>
    %cst_32 = arith.constant 1.000000e+00 : f32
    %84 = vector.broadcast %cst_32 : f32 to vector<20x128xf32>
    %85 = arith.addf %84, %83 : vector<20x128xf32>
    %86 = arith.mulf %80, %85 : vector<20x128xf32>
    %c0_33 = arith.constant 0 : index
    %c0_34 = arith.constant 0 : index
    %87 = vector.load %arg8[%c0_33, %c0_34] : memref<128x128xf32, #tpu.memory_space<vmem>>, vector<128x128xf32>
    %cst_35 = arith.constant dense<0.000000e+00> : vector<20x128xf32>
    %88 = tpu.matmul %86, %87, %cst_35 {dimension_numbers = #tpu.dot_dimension_numbers<[1], [0], [0], [1], [0, 0, 1, 1], [], []>} : vector<20x128xf32>, vector<128x128xf32>, vector<20x128xf32> -> vector<20x128xf32>
    %89 = vector.broadcast %9 : vector<1x128xf32> to vector<20x128xf32>
    %90 = arith.addf %88, %89 : vector<20x128xf32>
    %91 = arith.negf %90 : vector<20x128xf32>
    %92 = math.exp %91 : vector<20x128xf32>
    %cst_36 = arith.constant 1.000000e+00 : f32
    %93 = vector.broadcast %cst_36 : f32 to vector<20x128xf32>
    %94 = arith.addf %93, %92 : vector<20x128xf32>
    %95 = arith.divf %93, %94 : vector<20x128xf32>
    %96 = arith.mulf %73, %95 : vector<20x128xf32>
    %c0_37 = arith.constant 0 : index
    %c0_38 = arith.constant 0 : index
    %97 = vector.load %arg9[%c0_37, %c0_38] : memref<20x128xf32, #tpu.memory_space<vmem>>, vector<20x128xf32>
    tpu.vector_store %arg9[%c0_37, %c0_38], %96 {strides = array<i32>} : memref<20x128xf32, #tpu.memory_space<vmem>>, vector<20x128xf32>,
    return
  }
  func.func @transform_0(%arg0: i32) -> (i32, i32) {
    %c0_i32 = arith.constant 0 : i32
    %c0_i32_0 = arith.constant 0 : i32
    return %arg0, %c0_i32 : i32, i32
  }
  func.func @transform_1(%arg0: i32) -> (i32, i32) {
    %c0_i32 = arith.constant 0 : i32
    %c0_i32_0 = arith.constant 0 : i32
    %c0_i32_1 = arith.constant 0 : i32
    return %c0_i32, %c0_i32_0 : i32, i32
  }
  func.func @transform_2(%arg0: i32) -> (i32, i32) {
    %c0_i32 = arith.constant 0 : i32
    %c0_i32_0 = arith.constant 0 : i32
    %c0_i32_1 = arith.constant 0 : i32
    return %c0_i32, %c0_i32_0 : i32, i32
  }
  func.func @transform_3(%arg0: i32) -> (i32, i32) {
    %c0_i32 = arith.constant 0 : i32
    %c0_i32_0 = arith.constant 0 : i32
    %c0_i32_1 = arith.constant 0 : i32
    return %c0_i32, %c0_i32_0 : i32, i32
  }
  func.func @transform_4(%arg0: i32) -> (i32, i32) {
    %c0_i32 = arith.constant 0 : i32
    %c0_i32_0 = arith.constant 0 : i32
    %c0_i32_1 = arith.constant 0 : i32
    return %c0_i32, %c0_i32_0 : i32, i32
  }
  func.func @transform_5(%arg0: i32) -> (i32, i32) {
    %c0_i32 = arith.constant 0 : i32
    %c0_i32_0 = arith.constant 0 : i32
    %c0_i32_1 = arith.constant 0 : i32
    return %c0_i32, %c0_i32_0 : i32, i32
  }
  func.func @transform_6(%arg0: i32) -> (i32, i32) {
    %c0_i32 = arith.constant 0 : i32
    %c0_i32_0 = arith.constant 0 : i32
    %c0_i32_1 = arith.constant 0 : i32
    return %c0_i32, %c0_i32_0 : i32, i32
  }
  func.func @transform_7(%arg0: i32) -> (i32, i32) {
    %c0_i32 = arith.constant 0 : i32
    %c0_i32_0 = arith.constant 0 : i32
    %c0_i32_1 = arith.constant 0 : i32
    return %c0_i32, %c0_i32_0 : i32, i32
  }
  func.func @transform_8(%arg0: i32) -> (i32, i32) {
    %c0_i32 = arith.constant 0 : i32
    %c0_i32_0 = arith.constant 0 : i32
    return %arg0, %c0_i32 : i32, i32
  }
}

</mosaic_0001>

<llo_original>
// kernel: tpu_custom_call.1
$region0: #{tpu_custom_call.1}
  #allocation0 [shape = 'u32[]', space=smem, size = 0x4, offset = 0x4, fixed_abs, tag = 'smem constant byte address 0x4 - core index']
  #allocation1 [shape = 'u32[72,128]{1,0:T(1,128)}', space=vmem, size = 0x9000, scoped, tag = 'internal scratch']
  %s0 = inlined_call_operand.hbm [shape: f32[20,256], index: 0, kind: input, shape index: {}]
  %s1 = inlined_call_operand.hbm [shape: f32[256,256], index: 1, kind: input, shape index: {}]
  %s2 = inlined_call_operand.hbm [shape: f32[3,256], index: 2, kind: input, shape index: {}]
  %s3 = inlined_call_operand.hbm [shape: f32[256,128], index: 3, kind: input, shape index: {}]
  %s4 = inlined_call_operand.hbm [shape: f32[4,128], index: 4, kind: input, shape index: {}]
  %s5 = inlined_call_operand.hbm [shape: f32[128,128], index: 5, kind: input, shape index: {}]
  %s6 = inlined_call_operand.vmem [shape: f32[1,128], index: 6, kind: input, shape index: {}]
  %s7 = inlined_call_operand.hbm [shape: f32[128,128], index: 7, kind: input, shape index: {}]
  %s8 = inlined_call_operand.hbm [shape: f32[20,128], index: 8, kind: output, shape index: {}]
  %s9 = sld [smem:[#allocation0]]
  $region70: #{tpu_custom_call.1} parent=0
    _
  %s11 = ssub.s32 1, %s9
  %s12 = scalar_select 0, %s11, %s9
  $region1: #{tpu_custom_call.1} parent=0
    #allocation2 [shape = 'u8[24576]{0}', space=vmem, size = 0x6000, scoped, tag = 'input window, operand 0, single buffered']
    #allocation3 [shape = 's32[1]{0}', space=sflag, size = 0x4, scoped, tag = 'scoped memory for tpu_custom_call.1']
    #allocation4 [shape = 's32[1]{0}', space=sflag, size = 0x4, scoped, tag = 'scoped memory for tpu_custom_call.1']
    #allocation5 [shape = 'u8[262144]{0}', space=vmem, size = 0x40000, scoped, tag = 'input window, operand 1, single buffered']
    #allocation6 [shape = 's32[1]{0}', space=sflag, size = 0x4, scoped, tag = 'scoped memory for tpu_custom_call.1']
    #allocation7 [shape = 'u8[4096]{0}', space=vmem, size = 0x1000, scoped, tag = 'input window, operand 2, single buffered']
    #allocation8 [shape = 'u8[131072]{0}', space=vmem, size = 0x20000, scoped, tag = 'input window, operand 3, single buffered']
    #allocation9 [shape = 's32[1]{0}', space=sflag, size = 0x4, scoped, tag = 'scoped memory for tpu_custom_call.1']
    #allocation10 [shape = 'u8[2048]{0}', space=vmem, size = 0x800, scoped, tag = 'input window, operand 4, single buffered']
    #allocation11 [shape = 'u8[65536]{0}', space=vmem, size = 0x10000, scoped, tag = 'input window, operand 5, single buffered']
    #allocation12 [shape = 's32[1]{0}', space=sflag, size = 0x4, scoped, tag = 'scoped memory for tpu_custom_call.1']
    #allocation13 [shape = 'u8[65536]{0}', space=vmem, size = 0x10000, scoped, tag = 'input window, operand 7, single buffered']
    #allocation14 [shape = 'u8[12288]{0}', space=vmem, size = 0x3000, scoped, tag = 'output window, operand 0, single buffered']
    %13 = vsyncpa [#allocation3], 0
    %14 = vsyncpa [#allocation6], 0
    %15 = vsyncpa [#allocation9], 0
    %16 = vsyncpa [#allocation12], 0
    %17 = vsyncpa [#allocation4], 0
    // Predicated region
    $region2: #{tpu_custom_call.1} parent=1 // pred_check
      _
    $region3: #{tpu_custom_call.1} parent=1 // pred_check_branch
      %19 = sbr.rel (0) target = $region5
    $region4: #{tpu_custom_call.1} parent=1 // pred_region
      %21 = vsyncadd [#allocation3], 0
      %s22 = sshll.u32 %s0, 4
      %s23 = int_to_ptr.hbm [resolvable:$true] %s22
      %s24 = sshll.u32 [#allocation2], 4
      %s25 = int_to_ptr.vmem [resolvable:$true] %s24
      %30 = dma.hbm_to_vmem [thread:$0]  %s23, 768, %s25, [#allocation3], 256, 256, 16
    $region5: #{tpu_custom_call.1} parent=1 // pred_fallthru
      _
    // Predicated region
    $region6: #{tpu_custom_call.1} parent=1 // pred_check
      _
    $region7: #{tpu_custom_call.1} parent=1 // pred_check_branch
      %32 = sbr.rel (0) target = $region9
    $region8: #{tpu_custom_call.1} parent=1 // pred_region
      %34 = vsyncadd [#allocation6], 0
      %s35 = sshll.u32 %s1, 4
      %s36 = int_to_ptr.hbm [resolvable:$true] %s35
      %s37 = sshll.u32 [#allocation5], 4
      %s38 = int_to_ptr.vmem [resolvable:$true] %s37
      %43 = dma.hbm_to_vmem [thread:$0]  %s36, 8192, %s38, [#allocation6], 256, 256, 16
    $region9: #{tpu_custom_call.1} parent=1 // pred_fallthru
      _
    // Predicated region
    $region10: #{tpu_custom_call.1} parent=1 // pred_check
      _
    $region11: #{tpu_custom_call.1} parent=1 // pred_check_branch
      %45 = sbr.rel (0) target = $region13
    $region12: #{tpu_custom_call.1} parent=1 // pred_region
      %47 = vsyncadd [#allocation6], 0
      %s49 = sshll.u32 %s2, 4
      %s50 = int_to_ptr.hbm [resolvable:$true] %s49
      %s51 = sshll.u32 [#allocation7], 4
      %s52 = int_to_ptr.vmem [resolvable:$true] %s51
      %54 = dma.hbm_to_vmem [thread:$0]  %s50, 128, %s52, [#allocation6]
    $region13: #{tpu_custom_call.1} parent=1 // pred_fallthru
      _
    // Predicated region
    $region14: #{tpu_custom_call.1} parent=1 // pred_check
      _
    $region15: #{tpu_custom_call.1} parent=1 // pred_check_branch
      %56 = sbr.rel (0) target = $region17
    $region16: #{tpu_custom_call.1} parent=1 // pred_region
      %58 = vsyncadd [#allocation9], 0
      %s59 = sshll.u32 %s3, 4
      %s60 = int_to_ptr.hbm [resolvable:$true] %s59
      %s61 = sshll.u32 [#allocation8], 4
      %s62 = int_to_ptr.vmem [resolvable:$true] %s61
      %67 = dma.hbm_to_vmem [thread:$0]  %s60, 4096, %s62, [#allocation9], 128, 128, 8
    $region17: #{tpu_custom_call.1} parent=1 // pred_fallthru
      _
    // Predicated region
    $region18: #{tpu_custom_call.1} parent=1 // pred_check
      _
    $region19: #{tpu_custom_call.1} parent=1 // pred_check_branch
      %69 = sbr.rel (0) target = $region21
    $region20: #{tpu_custom_call.1} parent=1 // pred_region
      %71 = vsyncadd [#allocation9], 0
      %s73 = sshll.u32 %s4, 4
      %s74 = int_to_ptr.hbm [resolvable:$true] %s73
      %s75 = sshll.u32 [#allocation10], 4
      %s76 = int_to_ptr.vmem [resolvable:$true] %s75
      %78 = dma.hbm_to_vmem [thread:$0]  %s74, 64, %s76, [#allocation9]
    $region21: #{tpu_custom_call.1} parent=1 // pred_fallthru
      _
    // Predicated region
    $region22: #{tpu_custom_call.1} parent=1 // pred_check
      _
    $region23: #{tpu_custom_call.1} parent=1 // pred_check_branch
      %80 = sbr.rel (0) target = $region25
    $region24: #{tpu_custom_call.1} parent=1 // pred_region
      %82 = vsyncadd [#allocation12], 0
      %s83 = sshll.u32 %s5, 4
      %s84 = int_to_ptr.hbm [resolvable:$true] %s83
      %s85 = sshll.u32 [#allocation11], 4
      %s86 = int_to_ptr.vmem [resolvable:$true] %s85
      %91 = dma.hbm_to_vmem [thread:$0]  %s84, 2048, %s86, [#allocation12], 128, 128, 8
    $region25: #{tpu_custom_call.1} parent=1 // pred_fallthru
      _
    // Predicated region
    $region26: #{tpu_custom_call.1} parent=1 // pred_check
      _
    $region27: #{tpu_custom_call.1} parent=1 // pred_check_branch
      %93 = sbr.rel (0) target = $region29
    $region28: #{tpu_custom_call.1} parent=1 // pred_region
      _
    $region29: #{tpu_custom_call.1} parent=1 // pred_fallthru
      _
    // Predicated region
    $region30: #{tpu_custom_call.1} parent=1 // pred_check
      _
    $region31: #{tpu_custom_call.1} parent=1 // pred_check_branch
      %95 = sbr.rel (0) target = $region33
    $region32: #{tpu_custom_call.1} parent=1 // pred_region
      %97 = vsyncadd [#allocation12], 0
      %s98 = sshll.u32 %s7, 4
      %s99 = int_to_ptr.hbm [resolvable:$true] %s98
      %s100 = sshll.u32 [#allocation13], 4
      %s101 = int_to_ptr.vmem [resolvable:$true] %s100
      %106 = dma.hbm_to_vmem [thread:$0]  %s99, 2048, %s101, [#allocation12], 128, 128, 8
    $region33: #{tpu_custom_call.1} parent=1 // pred_fallthru
      _
    // Predicated region
    $region34: #{tpu_custom_call.1} parent=1 // pred_check
      _
    $region35: #{tpu_custom_call.1} parent=1 // pred_check_branch
      %108 = sbr.rel (0) target = $region37
    $region36: #{tpu_custom_call.1} parent=1 // pred_region
      %110 = dma.done [#allocation3], 768
    $region37: #{tpu_custom_call.1} parent=1 // pred_fallthru
      _
    // Predicated region
    $region38: #{tpu_custom_call.1} parent=1 // pred_check
      _
    $region39: #{tpu_custom_call.1} parent=1 // pred_check_branch
      %112 = sbr.rel (0) target = $region41
    $region40: #{tpu_custom_call.1} parent=1 // pred_region
      %114 = dma.done [#allocation6], 8192
    $region41: #{tpu_custom_call.1} parent=1 // pred_fallthru
      _
    // Predicated region
    $region42: #{tpu_custom_call.1} parent=1 // pred_check
      _
    $region43: #{tpu_custom_call.1} parent=1 // pred_check_branch
      %116 = sbr.rel (0) target = $region45
    $region44: #{tpu_custom_call.1} parent=1 // pred_region
      %118 = dma.done [#allocation6], 128
    $region45: #{tpu_custom_call.1} parent=1 // pred_fallthru
      _
    // Predicated region
    $region46: #{tpu_custom_call.1} parent=1 // pred_check
      _
    $region47: #{tpu_custom_call.1} parent=1 // pred_check_branch
      %120 = sbr.rel (0) target = $region49
    $region48: #{tpu_custom_call.1} parent=1 // pred_region
      %122 = dma.done [#allocation9], 4096
    $region49: #{tpu_custom_call.1} parent=1 // pred_fallthru
      _
    // Predicated region
    $region50: #{tpu_custom_call.1} parent=1 // pred_check
      _
    $region51: #{tpu_custom_call.1} parent=1 // pred_check_branch
      %124 = sbr.rel (0) target = $region53
    $region52: #{tpu_custom_call.1} parent=1 // pred_region
      %126 = dma.done [#allocation9], 64
    $region53: #{tpu_custom_call.1} parent=1 // pred_fallthru
      _
    // Predicated region
    $region54: #{tpu_custom_call.1} parent=1 // pred_check
      _
    $region55: #{tpu_custom_call.1} parent=1 // pred_check_branch
      %128 = sbr.rel (0) target = $region57
    $region56: #{tpu_custom_call.1} parent=1 // pred_region
      %130 = dma.done [#allocation12], 2048
    $region57: #{tpu_custom_call.1} parent=1 // pred_fallthru
      _
    // Predicated region
    $region58: #{tpu_custom_call.1} parent=1 // pred_check
      _
    $region59: #{tpu_custom_call.1} parent=1 // pred_check_branch
      %132 = sbr.rel (0) target = $region61
    $region60: #{tpu_custom_call.1} parent=1 // pred_region
      %134 = dma.done [#allocation12], 2048
    $region61: #{tpu_custom_call.1} parent=1 // pred_fallthru
      _
    %v135 = vld [vmem:[#allocation2] sm:$0xff]
    %v136 = vld [vmem:[#allocation2 + $0x8] sm:$0xff]
    %v137 = vld [vmem:[#allocation2 + $0x10] sm:$0xff]
    %v138 = vld [vmem:[#allocation2 + $0x18] sm:$0xff]
    %v139 = vld [vmem:[#allocation2 + $0x20] sm:$0xf]
    %v140 = vld [vmem:[#allocation2 + $0x28] sm:$0xf]
    %v141 = vld [vmem:[#allocation7] sm:$0x77]
    %v142 = vld [vmem:[#allocation10] sm:$0xf]
    %v143 = vld [vmem:[#allocation5] sm:$0xff]
    %v144 = vld [vmem:[#allocation5 + $0x8] sm:$0xff]
    %v145 = vld [vmem:[#allocation5 + $0x10] sm:$0xff]
    %v146 = vld [vmem:[#allocation5 + $0x18] sm:$0xff]
    %v147 = vld [vmem:[#allocation5 + $0x20] sm:$0xff]
    %v148 = vld [vmem:[#allocation5 + $0x28] sm:$0xff]
    %v149 = vld [vmem:[#allocation5 + $0x30] sm:$0xff]
    %v150 = vld [vmem:[#allocation5 + $0x38] sm:$0xff]
    %v151 = vld [vmem:[#allocation5 + $0x40] sm:$0xff]
    %v152 = vld [vmem:[#allocation5 + $0x48] sm:$0xff]
    %v153 = vld [vmem:[#allocation5 + $0x50] sm:$0xff]
    %v154 = vld [vmem:[#allocation5 + $0x58] sm:$0xff]
    %v155 = vld [vmem:[#allocation5 + $0x60] sm:$0xff]
    %v156 = vld [vmem:[#allocation5 + $0x68] sm:$0xff]
    %v157 = vld [vmem:[#allocation5 + $0x70] sm:$0xff]
    %v158 = vld [vmem:[#allocation5 + $0x78] sm:$0xff]
    %v159 = vld [vmem:[#allocation5 + $0x80] sm:$0xff]
    %v160 = vld [vmem:[#allocation5 + $0x88] sm:$0xff]
    %v161 = vld [vmem:[#allocation5 + $0x90] sm:$0xff]
    %v162 = vld [vmem:[#allocation5 + $0x98] sm:$0xff]
    %v163 = vld [vmem:[#allocation5 + $0xa0] sm:$0xff]
    %v164 = vld [vmem:[#allocation5 + $0xa8] sm:$0xff]
    %v165 = vld [vmem:[#allocation5 + $0xb0] sm:$0xff]
    %v166 = vld [vmem:[#allocation5 + $0xb8] sm:$0xff]
    %v167 = vld [vmem:[#allocation5 + $0xc0] sm:$0xff]
    %v168 = vld [vmem:[#allocation5 + $0xc8] sm:$0xff]
    %v169 = vld [vmem:[#allocation5 + $0xd0] sm:$0xff]
    %v170 = vld [vmem:[#allocation5 + $0xd8] sm:$0xff]
    %v171 = vld [vmem:[#allocation5 + $0xe0] sm:$0xff]
    %v172 = vld [vmem:[#allocation5 + $0xe8] sm:$0xff]
    %v173 = vld [vmem:[#allocation5 + $0xf0] sm:$0xff]
    %v174 = vld [vmem:[#allocation5 + $0xf8] sm:$0xff]
    %v175 = vld [vmem:[#allocation5 + $0x100] sm:$0xff]
    %v176 = vld [vmem:[#allocation5 + $0x108] sm:$0xff]
    %v177 = vld [vmem:[#allocation5 + $0x110] sm:$0xff]
    %v178 = vld [vmem:[#allocation5 + $0x118] sm:$0xff]
    %v179 = vld [vmem:[#allocation5 + $0x120] sm:$0xff]
    %v180 = vld [vmem:[#allocation5 + $0x128] sm:$0xff]
    %v181 = vld [vmem:[#allocation5 + $0x130] sm:$0xff]
    %v182 = vld [vmem:[#allocation5 + $0x138] sm:$0xff]
    %v183 = vld [vmem:[#allocation5 + $0x140] sm:$0xff]
    %v184 = vld [vmem:[#allocation5 + $0x148] sm:$0xff]
    %v185 = vld [vmem:[#allocation5 + $0x150] sm:$0xff]
    %v186 = vld [vmem:[#allocation5 + $0x158] sm:$0xff]
    %v187 = vld [vmem:[#allocation5 + $0x160] sm:$0xff]
    %v188 = vld [vmem:[#allocation5 + $0x168] sm:$0xff]
    %v189 = vld [vmem:[#allocation5 + $0x170] sm:$0xff]
    %v190 = vld [vmem:[#allocation5 + $0x178] sm:$0xff]
    %v191 = vld [vmem:[#allocation5 + $0x180] sm:$0xff]
    %v192 = vld [vmem:[#allocation5 + $0x188] sm:$0xff]
    %v193 = vld [vmem:[#allocation5 + $0x190] sm:$0xff]
    %v194 = vld [vmem:[#allocation5 + $0x198] sm:$0xff]
    %v195 = vld [vmem:[#allocation5 + $0x1a0] sm:$0xff]
    %v196 = vld [vmem:[#allocation5 + $0x1a8] sm:$0xff]
    %v197 = vld [vmem:[#allocation5 + $0x1b0] sm:$0xff]
    %v198 = vld [vmem:[#allocation5 + $0x1b8] sm:$0xff]
    %v199 = vld [vmem:[#allocation5 + $0x1c0] sm:$0xff]
    %v200 = vld [vmem:[#allocation5 + $0x1c8] sm:$0xff]
    %v201 = vld [vmem:[#allocation5 + $0x1d0] sm:$0xff]
    %v202 = vld [vmem:[#allocation5 + $0x1d8] sm:$0xff]
    %v203 = vld [vmem:[#allocation5 + $0x1e0] sm:$0xff]
    %v204 = vld [vmem:[#allocation5 + $0x1e8] sm:$0xff]
    %v205 = vld [vmem:[#allocation5 + $0x1f0] sm:$0xff]
    %v206 = vld [vmem:[#allocation5 + $0x1f8] sm:$0xff]
    %v208 = vperm.slane %v141, 0
    %v209 = vperm.slane %v141, 4
    %v212 = vperm.slane %v208, 0
    %v213 = vperm.slane %v209, 0
    %214 = vmatpush.msra.mxu0 %v173
    %215 = vmatpush.msra.mxu0 %v171
    %216 = vmatpush.msra.mxu0 %v169
    %217 = vmatpush.msra.mxu0 %v167
    %218 = vmatpush.msra.mxu0 %v165
    %219 = vmatpush.msra.mxu0 %v163
    %220 = vmatpush.msra.mxu0 %v161
    %221 = vmatpush.msra.mxu0 %v159
    %222 = vmatpush.msra.mxu0 %v157
    %223 = vmatpush.msra.mxu0 %v155
    %224 = vmatpush.msra.mxu0 %v153
    %225 = vmatpush.msra.mxu0 %v151
    %226 = vmatpush.msra.mxu0 %v149
    %227 = vmatpush.msra.mxu0 %v147
    %228 = vmatpush.msra.mxu0 %v145
    %229 = vmatpush.msra.mxu0 %v143
    %230 = vmatmul.f32.gmra.mxu0 %v135
    %v231 = vpop.f32.mrf.mxu0
    %v232 = vadd.f32 %v212, %v231
    %233 = vmatmul.f32.gmra.mxu0 %v137
    %v234 = vpop.f32.mrf.mxu0
    %v235 = vadd.f32 %v212, %v234
    %236 = vmatmul.f32.gmra.mxu0 %v139
    %v237 = vpop.f32.mrf.mxu0
    %v238 = vadd.f32 %v212, %v237
    %239 = vdwg.mxu0
    %240 = vmatpush.msra.mxu0 %v205
    %241 = vmatpush.msra.mxu0 %v203
    %242 = vmatpush.msra.mxu0 %v201
    %243 = vmatpush.msra.mxu0 %v199
    %244 = vmatpush.msra.mxu0 %v197
    %245 = vmatpush.msra.mxu0 %v195
    %246 = vmatpush.msra.mxu0 %v193
    %247 = vmatpush.msra.mxu0 %v191
    %248 = vmatpush.msra.mxu0 %v189
    %249 = vmatpush.msra.mxu0 %v187
    %250 = vmatpush.msra.mxu0 %v185
    %251 = vmatpush.msra.mxu0 %v183
    %252 = vmatpush.msra.mxu0 %v181
    %253 = vmatpush.msra.mxu0 %v179
    %254 = vmatpush.msra.mxu0 %v177
    %255 = vmatpush.msra.mxu0 %v175
    %256 = vmatmul.f32.gmra.mxu0 %v136
    %v257 = vpop.f32.mrf.mxu0
    %v258 = vadd.f32 %v232, %v257
    %259 = vmatmul.f32.gmra.mxu0 %v138
    %v260 = vpop.f32.mrf.mxu0
    %v261 = vadd.f32 %v235, %v260
    %262 = vmatmul.f32.gmra.mxu0 %v140
    %v263 = vpop.f32.mrf.mxu0
    %v264 = vadd.f32 %v238, %v263
    %265 = vdwg.mxu0
    %266 = vmatpush.msra.mxu0 %v174
    %267 = vmatpush.msra.mxu0 %v172
    %268 = vmatpush.msra.mxu0 %v170
    %269 = vmatpush.msra.mxu0 %v168
    %270 = vmatpush.msra.mxu0 %v166
    %271 = vmatpush.msra.mxu0 %v164
    %272 = vmatpush.msra.mxu0 %v162
    %273 = vmatpush.msra.mxu0 %v160
    %274 = vmatpush.msra.mxu0 %v158
    %275 = vmatpush.msra.mxu0 %v156
    %276 = vmatpush.msra.mxu0 %v154
    %277 = vmatpush.msra.mxu0 %v152
    %278 = vmatpush.msra.mxu0 %v150
    %279 = vmatpush.msra.mxu0 %v148
    %280 = vmatpush.msra.mxu0 %v146
    %281 = vmatpush.msra.mxu0 %v144
    %282 = vmatmul.f32.gmra.mxu0 %v135
    %v283 = vpop.f32.mrf.mxu0
    %v284 = vadd.f32 %v213, %v283
    %285 = vmatmul.f32.gmra.mxu0 %v137
    %v286 = vpop.f32.mrf.mxu0
    %v287 = vadd.f32 %v213, %v286
    %288 = vmatmul.f32.gmra.mxu0 %v139
    %v289 = vpop.f32.mrf.mxu0
    %v290 = vadd.f32 %v213, %v289
    %291 = vdwg.mxu0
    %292 = vmatpush.msra.mxu0 %v206
    %293 = vmatpush.msra.mxu0 %v204
    %294 = vmatpush.msra.mxu0 %v202
    %295 = vmatpush.msra.mxu0 %v200
    %296 = vmatpush.msra.mxu0 %v198
    %297 = vmatpush.msra.mxu0 %v196
    %298 = vmatpush.msra.mxu0 %v194
    %299 = vmatpush.msra.mxu0 %v192
    %300 = vmatpush.msra.mxu0 %v190
    %301 = vmatpush.msra.mxu0 %v188
    %302 = vmatpush.msra.mxu0 %v186
    %303 = vmatpush.msra.mxu0 %v184
    %304 = vmatpush.msra.mxu0 %v182
    %305 = vmatpush.msra.mxu0 %v180
    %306 = vmatpush.msra.mxu0 %v178
    %307 = vmatpush.msra.mxu0 %v176
    %308 = vmatmul.f32.gmra.mxu0 %v136
    %v309 = vpop.f32.mrf.mxu0
    %v310 = vadd.f32 %v284, %v309
    %311 = vmatmul.f32.gmra.mxu0 %v138
    %v312 = vpop.f32.mrf.mxu0
    %v313 = vadd.f32 %v287, %v312
    %314 = vmatmul.f32.gmra.mxu0 %v140
    %v315 = vpop.f32.mrf.mxu0
    %v316 = vadd.f32 %v290, %v315
    %317 = vdwg.mxu0
    %v318 = vadd.f32 %v258, %v310
    %319 = vadd.xlane.f32.xlu0 %v318
    %v320 = vpop.xlane.xlu0 %319
    %v321 = vadd.f32 %v261, %v313
    %322 = vadd.xlane.f32.xlu0 %v321
    %v323 = vpop.xlane.xlu0 %322
    %vm324 = vcmask 1043456
    %v325 = vsel %vm324, %v264, 0.0
    %v326 = vsel %vm324, %v316, 0.0
    %v327 = vadd.f32 %v325, %v326
    %328 = vadd.xlane.f32.xlu0 %v327
    %v329 = vpop.xlane.xlu0 %328
    %v330 = vrcp.pop 256.0
    %v331 = vmul.f32 256.0, %v330
    %v332 = vsub.f32 1.0, %v331
    %v333 = vmul.f32 %v330, %v332
    %v334 = vadd.f32 %v330, %v333
    %vm335 = vweird.f32 %v330
    %v336 = vsel %vm335, %v330, %v334
    %v337 = vmul.f32 %v320, %v336
    %v338 = vmul.f32 %v323, %v336
    %v339 = vmul.f32 %v329, %v336
    %v340 = vmul.f32 %v258, %v258
    %v341 = vmul.f32 %v310, %v310
    %v342 = vmul.f32 %v261, %v261
    %v343 = vmul.f32 %v313, %v313
    %v344 = vmul.f32 %v264, %v264
    %v345 = vmul.f32 %v316, %v316
    %v346 = vadd.f32 %v340, %v341
    %347 = vadd.xlane.f32.xlu0 %v346
    %v348 = vpop.xlane.xlu0 %347
    %v349 = vadd.f32 %v342, %v343
    %350 = vadd.xlane.f32.xlu0 %v349
    %v351 = vpop.xlane.xlu0 %350
    %v352 = vsel %vm324, %v344, 0.0
    %v353 = vsel %vm324, %v345, 0.0
    %v354 = vadd.f32 %v352, %v353
    %355 = vadd.xlane.f32.xlu0 %v354
    %v356 = vpop.xlane.xlu0 %355
    %v357 = vmul.f32 %v348, %v336
    %v358 = vmul.f32 %v351, %v336
    %v359 = vmul.f32 %v356, %v336
    %v360 = vmul.f32 %v337, %v337
    %v361 = vmul.f32 %v338, %v338
    %v362 = vmul.f32 %v339, %v339
    %v363 = vsub.f32 %v357, %v360
    %v364 = vsub.f32 %v358, %v361
    %v365 = vsub.f32 %v359, %v362
    %v366 = vmax.f32 %v363, 0.0
    %v367 = vmax.f32 %v364, 0.0
    %v368 = vmax.f32 %v365, 0.0
    %v369 = vadd.f32 %v366, 1e-05
    %v370 = vadd.f32 %v367, 1e-05
    %v371 = vadd.f32 %v368, 1e-05
    %v372 = vrsqrt.pop %v369
    %v373 = vmul.f32 %v372, %v369
    %v374 = vmul.f32 %v373, %v372
    %v375 = vmul.f32 0.5, %v374
    %v376 = vsub.f32 1.5, %v375
    %v377 = vmul.f32 %v372, %v376
    %vm378 = vweird.f32 %v369
    %vm379 = vweird.f32 %v372
    %vm380 = vmor %vm378, %vm379
    %v381 = vsel %vm380, %v372, %v377
    %v382 = vrsqrt.pop %v370
    %v383 = vmul.f32 %v382, %v370
    %v384 = vmul.f32 %v383, %v382
    %v385 = vmul.f32 0.5, %v384
    %v386 = vsub.f32 1.5, %v385
    %v387 = vmul.f32 %v382, %v386
    %vm388 = vweird.f32 %v370
    %vm389 = vweird.f32 %v382
    %vm390 = vmor %vm388, %vm389
    %v391 = vsel %vm390, %v382, %v387
    %v392 = vrsqrt.pop %v371
    %v393 = vmul.f32 %v392, %v371
    %v394 = vmul.f32 %v393, %v392
    %v395 = vmul.f32 0.5, %v394
    %v396 = vsub.f32 1.5, %v395
    %v397 = vmul.f32 %v392, %v396
    %vm398 = vweird.f32 %v371
    %vm399 = vweird.f32 %v392
    %vm400 = vmor %vm398, %vm399
    %v401 = vsel %vm400, %v392, %v397
    %v402 = vsub.f32 %v258, %v337
    %v403 = vsub.f32 %v310, %v337
    %v404 = vsub.f32 %v261, %v338
    %v405 = vsub.f32 %v313, %v338
    %v406 = vsub.f32 %v264, %v339
    %v407 = vsub.f32 %v316, %v339
    %v408 = vmul.f32 %v402, %v381
    %v409 = vmul.f32 %v403, %v381
    %v410 = vmul.f32 %v404, %v391
    %v411 = vmul.f32 %v405, %v391
    %v412 = vmul.f32 %v406, %v401
    %v413 = vmul.f32 %v407, %v401
    %v414 = vperm.slane %v141, 1
    %v415 = vperm.slane %v141, 5
    %v418 = vperm.slane %v414, 1
    %v419 = vperm.slane %v415, 1
    %v420 = vmul.f32 %v408, %v418
    %v421 = vmul.f32 %v409, %v419
    %v422 = vmul.f32 %v410, %v418
    %v423 = vmul.f32 %v411, %v419
    %v424 = vmul.f32 %v412, %v418
    %v425 = vmul.f32 %v413, %v419
    %v426 = vperm.slane %v141, 2
    %v427 = vperm.slane %v141, 6
    %v430 = vperm.slane %v426, 2
    %v431 = vperm.slane %v427, 2
    %v432 = vadd.f32 %v420, %v430
    %v433 = vadd.f32 %v421, %v431
    %v434 = vadd.f32 %v422, %v430
    %v435 = vadd.f32 %v423, %v431
    %v436 = vadd.f32 %v424, %v430
    %v437 = vadd.f32 %v425, %v431
    %v438 = vmul.f32 %v432, 0.5
    %v439 = vmul.f32 %v433, 0.5
    %v440 = vmul.f32 %v434, 0.5
    %v441 = vmul.f32 %v435, 0.5
    %v442 = vmul.f32 %v436, 0.5
    %v443 = vmul.f32 %v437, 0.5
    %v444 = vmul.f32 %v432, 0.70710677
    %v445 = vmul.f32 %v433, 0.70710677
    %v446 = vmul.f32 %v434, 0.70710677
    %v447 = vmul.f32 %v435, 0.70710677
    %v448 = vmul.f32 %v436, 0.70710677
    %v449 = vmul.f32 %v437, 0.70710677
    %v450 = vmul.f32 %v444, %v444
    %v451 = vmin.f32 16.0, %v450
    %v452 = vmul.f32 %v451, 2.1237322e-06
    %v453 = vadd.f32 %v452, 0.00028619796
    %v454 = vmul.f32 %v451, %v453
    %v455 = vadd.f32 %v454, 0.0036580483
    %v456 = vmul.f32 %v451, %v455
    %v457 = vadd.f32 %v456, 0.05243302
    %v458 = vmul.f32 %v451, %v457
    %v459 = vadd.f32 %v458, 0.18741608
    %v460 = vmul.f32 %v451, %v459
    %v461 = vadd.f32 %v460, 1.1283791
    %v462 = vmul.f32 %v444, %v461
    %v463 = vmul.f32 %v451, 3.8918573e-05
    %v464 = vadd.f32 %v463, 0.001143296
    %v465 = vmul.f32 %v451, %v464
    %v466 = vadd.f32 %v465, 0.014752088
    %v467 = vmul.f32 %v451, %v466
    %v468 = vadd.f32 %v467, 0.112945676
    %v469 = vmul.f32 %v451, %v468
    %v470 = vadd.f32 %v469, 0.4994258
    %v471 = vmul.f32 %v451, %v470
    %v472 = vadd.f32 %v471, 1.0
    %v473 = vrcp.pop %v472
    %v474 = vmul.f32 %v472, %v473
    %v475 = vsub.f32 1.0, %v474
    %v476 = vmul.f32 %v473, %v475
    %v477 = vadd.f32 %v473, %v476
    %vm478 = vweird.f32 %v472
    %vm479 = vweird.f32 %v473
    %vm480 = vmor %vm478, %vm479
    %v481 = vsel %vm480, %v473, %v477
    %v482 = vand.u32 2147483647, %v472
    %vm483 = vcmp.eq.f32.partialorder %v482, 8.507059e+37
    %v484 = vand.u32 %v472, 2147483648
    %v485 = vor.u32 1.1754944e-38, %v484
    %v486 = vsel %vm483, %v485, %v481
    %v487 = vmul.f32 %v462, %v486
    %v488 = vmin.f32 %v487, 1.0
    %v489 = vmax.f32 %v488, -1.0
    %v490 = vmul.f32 %v445, %v445
    %v491 = vmin.f32 16.0, %v490
    %v492 = vmul.f32 %v491, 2.1237322e-06
    %v493 = vadd.f32 %v492, 0.00028619796
    %v494 = vmul.f32 %v491, %v493
    %v495 = vadd.f32 %v494, 0.0036580483
    %v496 = vmul.f32 %v491, %v495
    %v497 = vadd.f32 %v496, 0.05243302
    %v498 = vmul.f32 %v491, %v497
    %v499 = vadd.f32 %v498, 0.18741608
    %v500 = vmul.f32 %v491, %v499
    %v501 = vadd.f32 %v500, 1.1283791
    %v502 = vmul.f32 %v445, %v501
    %v503 = vmul.f32 %v491, 3.8918573e-05
    %v504 = vadd.f32 %v503, 0.001143296
    %v505 = vmul.f32 %v491, %v504
    %v506 = vadd.f32 %v505, 0.014752088
    %v507 = vmul.f32 %v491, %v506
    %v508 = vadd.f32 %v507, 0.112945676
    %v509 = vmul.f32 %v491, %v508
    %v510 = vadd.f32 %v509, 0.4994258
    %v511 = vmul.f32 %v491, %v510
    %v512 = vadd.f32 %v511, 1.0
    %v513 = vrcp.pop %v512
    %v514 = vmul.f32 %v512, %v513
    %v515 = vsub.f32 1.0, %v514
    %v516 = vmul.f32 %v513, %v515
    %v517 = vadd.f32 %v513, %v516
    %vm518 = vweird.f32 %v512
    %vm519 = vweird.f32 %v513
    %vm520 = vmor %vm518, %vm519
    %v521 = vsel %vm520, %v513, %v517
    %v522 = vand.u32 2147483647, %v512
    %vm523 = vcmp.eq.f32.partialorder %v522, 8.507059e+37
    %v524 = vand.u32 %v512, 2147483648
    %v525 = vor.u32 1.1754944e-38, %v524
    %v526 = vsel %vm523, %v525, %v521
    %v527 = vmul.f32 %v502, %v526
    %v528 = vmin.f32 %v527, 1.0
    %v529 = vmax.f32 %v528, -1.0
    %v530 = vmul.f32 %v446, %v446
    %v531 = vmin.f32 16.0, %v530
    %v532 = vmul.f32 %v531, 2.1237322e-06
    %v533 = vadd.f32 %v532, 0.00028619796
    %v534 = vmul.f32 %v531, %v533
    %v535 = vadd.f32 %v534, 0.0036580483
    %v536 = vmul.f32 %v531, %v535
    %v537 = vadd.f32 %v536, 0.05243302
    %v538 = vmul.f32 %v531, %v537
    %v539 = vadd.f32 %v538, 0.18741608
    %v540 = vmul.f32 %v531, %v539
    %v541 = vadd.f32 %v540, 1.1283791
    %v542 = vmul.f32 %v446, %v541
    %v543 = vmul.f32 %v531, 3.8918573e-05
    %v544 = vadd.f32 %v543, 0.001143296
    %v545 = vmul.f32 %v531, %v544
    %v546 = vadd.f32 %v545, 0.014752088
    %v547 = vmul.f32 %v531, %v546
    %v548 = vadd.f32 %v547, 0.112945676
    %v549 = vmul.f32 %v531, %v548
    %v550 = vadd.f32 %v549, 0.4994258
    %v551 = vmul.f32 %v531, %v550
    %v552 = vadd.f32 %v551, 1.0
    %v553 = vrcp.pop %v552
    %v554 = vmul.f32 %v552, %v553
    %v555 = vsub.f32 1.0, %v554
    %v556 = vmul.f32 %v553, %v555
    %v557 = vadd.f32 %v553, %v556
    %vm558 = vweird.f32 %v552
    %vm559 = vweird.f32 %v553
    %vm560 = vmor %vm558, %vm559
    %v561 = vsel %vm560, %v553, %v557
    %v562 = vand.u32 2147483647, %v552
    %vm563 = vcmp.eq.f32.partialorder %v562, 8.507059e+37
    %v564 = vand.u32 %v552, 2147483648
    %v565 = vor.u32 1.1754944e-38, %v564
    %v566 = vsel %vm563, %v565, %v561
    %v567 = vmul.f32 %v542, %v566
    %v568 = vmin.f32 %v567, 1.0
    %v569 = vmax.f32 %v568, -1.0
    %v570 = vmul.f32 %v447, %v447
    %v571 = vmin.f32 16.0, %v570
    %v572 = vmul.f32 %v571, 2.1237322e-06
    %v573 = vadd.f32 %v572, 0.00028619796
    %v574 = vmul.f32 %v571, %v573
    %v575 = vadd.f32 %v574, 0.0036580483
    %v576 = vmul.f32 %v571, %v575
    %v577 = vadd.f32 %v576, 0.05243302
    %v578 = vmul.f32 %v571, %v577
    %v579 = vadd.f32 %v578, 0.18741608
    %v580 = vmul.f32 %v571, %v579
    %v581 = vadd.f32 %v580, 1.1283791
    %v582 = vmul.f32 %v447, %v581
    %v583 = vmul.f32 %v571, 3.8918573e-05
    %v584 = vadd.f32 %v583, 0.001143296
    %v585 = vmul.f32 %v571, %v584
    %v586 = vadd.f32 %v585, 0.014752088
    %v587 = vmul.f32 %v571, %v586
    %v588 = vadd.f32 %v587, 0.112945676
    %v589 = vmul.f32 %v571, %v588
    %v590 = vadd.f32 %v589, 0.4994258
    %v591 = vmul.f32 %v571, %v590
    %v592 = vadd.f32 %v591, 1.0
    %v593 = vrcp.pop %v592
    %v594 = vmul.f32 %v592, %v593
    %v595 = vsub.f32 1.0, %v594
    %v596 = vmul.f32 %v593, %v595
    %v597 = vadd.f32 %v593, %v596
    %vm598 = vweird.f32 %v592
    %vm599 = vweird.f32 %v593
    %vm600 = vmor %vm598, %vm599
    %v601 = vsel %vm600, %v593, %v597
    %v602 = vand.u32 2147483647, %v592
    %vm603 = vcmp.eq.f32.partialorder %v602, 8.507059e+37
    %v604 = vand.u32 %v592, 2147483648
    %v605 = vor.u32 1.1754944e-38, %v604
    %v606 = vsel %vm603, %v605, %v601
    %v607 = vmul.f32 %v582, %v606
    %v608 = vmin.f32 %v607, 1.0
    %v609 = vmax.f32 %v608, -1.0
    %v610 = vmul.f32 %v448, %v448
    %v611 = vmin.f32 16.0, %v610
    %v612 = vmul.f32 %v611, 2.1237322e-06
    %v613 = vadd.f32 %v612, 0.00028619796
    %v614 = vmul.f32 %v611, %v613
    %v615 = vadd.f32 %v614, 0.0036580483
    %v616 = vmul.f32 %v611, %v615
    %v617 = vadd.f32 %v616, 0.05243302
    %v618 = vmul.f32 %v611, %v617
    %v619 = vadd.f32 %v618, 0.18741608
    %v620 = vmul.f32 %v611, %v619
    %v621 = vadd.f32 %v620, 1.1283791
    %v622 = vmul.f32 %v448, %v621
    %v623 = vmul.f32 %v611, 3.8918573e-05
    %v624 = vadd.f32 %v623, 0.001143296
    %v625 = vmul.f32 %v611, %v624
    %v626 = vadd.f32 %v625, 0.014752088
    %v627 = vmul.f32 %v611, %v626
    %v628 = vadd.f32 %v627, 0.112945676
    %v629 = vmul.f32 %v611, %v628
    %v630 = vadd.f32 %v629, 0.4994258
    %v631 = vmul.f32 %v611, %v630
    %v632 = vadd.f32 %v631, 1.0
    %v633 = vrcp.pop %v632
    %v634 = vmul.f32 %v632, %v633
    %v635 = vsub.f32 1.0, %v634
    %v636 = vmul.f32 %v633, %v635
    %v637 = vadd.f32 %v633, %v636
    %vm638 = vweird.f32 %v632
    %vm639 = vweird.f32 %v633
    %vm640 = vmor %vm638, %vm639
    %v641 = vsel %vm640, %v633, %v637
    %v642 = vand.u32 2147483647, %v632
    %vm643 = vcmp.eq.f32.partialorder %v642, 8.507059e+37
    %v644 = vand.u32 %v632, 2147483648
    %v645 = vor.u32 1.1754944e-38, %v644
    %v646 = vsel %vm643, %v645, %v641
    %v647 = vmul.f32 %v622, %v646
    %v648 = vmin.f32 %v647, 1.0
    %v649 = vmax.f32 %v648, -1.0
    %v650 = vmul.f32 %v449, %v449
    %v651 = vmin.f32 16.0, %v650
    %v652 = vmul.f32 %v651, 2.1237322e-06
    %v653 = vadd.f32 %v652, 0.00028619796
    %v654 = vmul.f32 %v651, %v653
    %v655 = vadd.f32 %v654, 0.0036580483
    %v656 = vmul.f32 %v651, %v655
    %v657 = vadd.f32 %v656, 0.05243302
    %v658 = vmul.f32 %v651, %v657
    %v659 = vadd.f32 %v658, 0.18741608
    %v660 = vmul.f32 %v651, %v659
    %v661 = vadd.f32 %v660, 1.1283791
    %v662 = vmul.f32 %v449, %v661
    %v663 = vmul.f32 %v651, 3.8918573e-05
    %v664 = vadd.f32 %v663, 0.001143296
    %v665 = vmul.f32 %v651, %v664
    %v666 = vadd.f32 %v665, 0.014752088
    %v667 = vmul.f32 %v651, %v666
    %v668 = vadd.f32 %v667, 0.112945676
    %v669 = vmul.f32 %v651, %v668
    %v670 = vadd.f32 %v669, 0.4994258
    %v671 = vmul.f32 %v651, %v670
    %v672 = vadd.f32 %v671, 1.0
    %v673 = vrcp.pop %v672
    %v674 = vmul.f32 %v672, %v673
    %v675 = vsub.f32 1.0, %v674
    %v676 = vmul.f32 %v673, %v675
    %v677 = vadd.f32 %v673, %v676
    %vm678 = vweird.f32 %v672
    %vm679 = vweird.f32 %v673
    %vm680 = vmor %vm678, %vm679
    %v681 = vsel %vm680, %v673, %v677
    %v682 = vand.u32 2147483647, %v672
    %vm683 = vcmp.eq.f32.partialorder %v682, 8.507059e+37
    %v684 = vand.u32 %v672, 2147483648
    %v685 = vor.u32 1.1754944e-38, %v684
    %v686 = vsel %vm683, %v685, %v681
    %v687 = vmul.f32 %v662, %v686
    %v688 = vmin.f32 %v687, 1.0
    %v689 = vmax.f32 %v688, -1.0
    %v690 = vadd.f32 %v489, 1.0
    %v691 = vadd.f32 %v529, 1.0
    %v692 = vadd.f32 %v569, 1.0
    %v693 = vadd.f32 %v609, 1.0
    %v694 = vadd.f32 %v649, 1.0
    %v695 = vadd.f32 %v689, 1.0
    %v696 = vmul.f32 %v438, %v690
    %v697 = vmul.f32 %v439, %v691
    %v698 = vmul.f32 %v440, %v692
    %v699 = vmul.f32 %v441, %v693
    %v700 = vmul.f32 %v442, %v694
    %v701 = vmul.f32 %v443, %v695
    %v702 = vld [vmem:[#allocation8] sm:$0xff]
    %v703 = vld [vmem:[#allocation8 + $0x8] sm:$0xff]
    %v704 = vld [vmem:[#allocation8 + $0x10] sm:$0xff]
    %v705 = vld [vmem:[#allocation8 + $0x18] sm:$0xff]
    %v706 = vld [vmem:[#allocation8 + $0x20] sm:$0xff]
    %v707 = vld [vmem:[#allocation8 + $0x28] sm:$0xff]
    %v708 = vld [vmem:[#allocation8 + $0x30] sm:$0xff]
    %v709 = vld [vmem:[#allocation8 + $0x38] sm:$0xff]
    %v710 = vld [vmem:[#allocation8 + $0x40] sm:$0xff]
    %v711 = vld [vmem:[#allocation8 + $0x48] sm:$0xff]
    %v712 = vld [vmem:[#allocation8 + $0x50] sm:$0xff]
    %v713 = vld [vmem:[#allocation8 + $0x58] sm:$0xff]
    %v714 = vld [vmem:[#allocation8 + $0x60] sm:$0xff]
    %v715 = vld [vmem:[#allocation8 + $0x68] sm:$0xff]
    %v716 = vld [vmem:[#allocation8 + $0x70] sm:$0xff]
    %v717 = vld [vmem:[#allocation8 + $0x78] sm:$0xff]
    %v718 = vld [vmem:[#allocation8 + $0x80] sm:$0xff]
    %v719 = vld [vmem:[#allocation8 + $0x88] sm:$0xff]
    %v720 = vld [vmem:[#allocation8 + $0x90] sm:$0xff]
    %v721 = vld [vmem:[#allocation8 + $0x98] sm:$0xff]
    %v722 = vld [vmem:[#allocation8 + $0xa0] sm:$0xff]
    %v723 = vld [vmem:[#allocation8 + $0xa8] sm:$0xff]
    %v724 = vld [vmem:[#allocation8 + $0xb0] sm:$0xff]
    %v725 = vld [vmem:[#allocation8 + $0xb8] sm:$0xff]
    %v726 = vld [vmem:[#allocation8 + $0xc0] sm:$0xff]
    %v727 = vld [vmem:[#allocation8 + $0xc8] sm:$0xff]
    %v728 = vld [vmem:[#allocation8 + $0xd0] sm:$0xff]
    %v729 = vld [vmem:[#allocation8 + $0xd8] sm:$0xff]
    %v730 = vld [vmem:[#allocation8 + $0xe0] sm:$0xff]
    %v731 = vld [vmem:[#allocation8 + $0xe8] sm:$0xff]
    %v732 = vld [vmem:[#allocation8 + $0xf0] sm:$0xff]
    %v733 = vld [vmem:[#allocation8 + $0xf8] sm:$0xff]
    %v734 = vperm.slane %v142, 0
    %735 = vmatpush.msra.mxu0 %v717
    %736 = vmatpush.msra.mxu0 %v716
    %737 = vmatpush.msra.mxu0 %v715
    %738 = vmatpush.msra.mxu0 %v714
    %739 = vmatpush.msra.mxu0 %v713
    %740 = vmatpush.msra.mxu0 %v712
    %741 = vmatpush.msra.mxu0 %v711
    %742 = vmatpush.msra.mxu0 %v710
    %743 = vmatpush.msra.mxu0 %v709
    %744 = vmatpush.msra.mxu0 %v708
    %745 = vmatpush.msra.mxu0 %v707
    %746 = vmatpush.msra.mxu0 %v706
    %747 = vmatpush.msra.mxu0 %v705
    %748 = vmatpush.msra.mxu0 %v704
    %749 = vmatpush.msra.mxu0 %v703
    %750 = vmatpush.msra.mxu0 %v702
    %751 = vmatmul.f32.gmra.mxu0 %v696
    %v752 = vpop.f32.mrf.mxu0
    %v753 = vadd.f32 %v734, %v752
    %754 = vmatmul.f32.gmra.mxu0 %v698
    %v755 = vpop.f32.mrf.mxu0
    %v756 = vadd.f32 %v734, %v755
    %757 = vmatmul.f32.gmra.mxu0 %v700
    %v758 = vpop.f32.mrf.mxu0
    %v759 = vadd.f32 %v734, %v758
    %760 = vdwg.mxu0
    %761 = vmatpush.msra.mxu0 %v733
    %762 = vmatpush.msra.mxu0 %v732
    %763 = vmatpush.msra.mxu0 %v731
    %764 = vmatpush.msra.mxu0 %v730
    %765 = vmatpush.msra.mxu0 %v729
    %766 = vmatpush.msra.mxu0 %v728
    %767 = vmatpush.msra.mxu0 %v727
    %768 = vmatpush.msra.mxu0 %v726
    %769 = vmatpush.msra.mxu0 %v725
    %770 = vmatpush.msra.mxu0 %v724
    %771 = vmatpush.msra.mxu0 %v723
    %772 = vmatpush.msra.mxu0 %v722
    %773 = vmatpush.msra.mxu0 %v721
    %774 = vmatpush.msra.mxu0 %v720
    %775 = vmatpush.msra.mxu0 %v719
    %776 = vmatpush.msra.mxu0 %v718
    %777 = vmatmul.f32.gmra.mxu0 %v697
    %v778 = vpop.f32.mrf.mxu0
    %v779 = vadd.f32 %v753, %v778
    %780 = vmatmul.f32.gmra.mxu0 %v699
    %v781 = vpop.f32.mrf.mxu0
    %v782 = vadd.f32 %v756, %v781
    %783 = vmatmul.f32.gmra.mxu0 %v701
    %v784 = vpop.f32.mrf.mxu0
    %v785 = vadd.f32 %v759, %v784
    %786 = vdwg.mxu0
    %787 = vadd.xlane.f32.xlu0 %v779
    %v788 = vpop.xlane.xlu0 %787
    %789 = vadd.xlane.f32.xlu0 %v782
    %v790 = vpop.xlane.xlu0 %789
    %v791 = vsel %vm324, %v785, 0.0
    %792 = vadd.xlane.f32.xlu0 %v791
    %v793 = vpop.xlane.xlu0 %792
    %v794 = vrcp.pop 128.0
    %v795 = vmul.f32 128.0, %v794
    %v796 = vsub.f32 1.0, %v795
    %v797 = vmul.f32 %v794, %v796
    %v798 = vadd.f32 %v794, %v797
    %vm799 = vweird.f32 %v794
    %v800 = vsel %vm799, %v794, %v798
    %v801 = vmul.f32 %v788, %v800
    %v802 = vmul.f32 %v790, %v800
    %v803 = vmul.f32 %v793, %v800
    %v804 = vmul.f32 %v779, %v779
    %v805 = vmul.f32 %v782, %v782
    %v806 = vmul.f32 %v785, %v785
    %807 = vadd.xlane.f32.xlu0 %v804
    %v808 = vpop.xlane.xlu0 %807
    %809 = vadd.xlane.f32.xlu0 %v805
    %v810 = vpop.xlane.xlu0 %809
    %v811 = vsel %vm324, %v806, 0.0
    %812 = vadd.xlane.f32.xlu0 %v811
    %v813 = vpop.xlane.xlu0 %812
    %v814 = vmul.f32 %v808, %v800
    %v815 = vmul.f32 %v810, %v800
    %v816 = vmul.f32 %v813, %v800
    %v817 = vmul.f32 %v801, %v801
    %v818 = vmul.f32 %v802, %v802
    %v819 = vmul.f32 %v803, %v803
    %v820 = vsub.f32 %v814, %v817
    %v821 = vsub.f32 %v815, %v818
    %v822 = vsub.f32 %v816, %v819
    %v823 = vmax.f32 %v820, 0.0
    %v824 = vmax.f32 %v821, 0.0
    %v825 = vmax.f32 %v822, 0.0
    %v826 = vadd.f32 %v823, 1e-05
    %v827 = vadd.f32 %v824, 1e-05
    %v828 = vadd.f32 %v825, 1e-05
    %v829 = vrsqrt.pop %v826
    %v830 = vmul.f32 %v829, %v826
    %v831 = vmul.f32 %v830, %v829
    %v832 = vmul.f32 0.5, %v831
    %v833 = vsub.f32 1.5, %v832
    %v834 = vmul.f32 %v829, %v833
    %vm835 = vweird.f32 %v826
    %vm836 = vweird.f32 %v829
    %vm837 = vmor %vm835, %vm836
    %v838 = vsel %vm837, %v829, %v834
    %v839 = vrsqrt.pop %v827
    %v840 = vmul.f32 %v839, %v827
    %v841 = vmul.f32 %v840, %v839
    %v842 = vmul.f32 0.5, %v841
    %v843 = vsub.f32 1.5, %v842
    %v844 = vmul.f32 %v839, %v843
    %vm845 = vweird.f32 %v827
    %vm846 = vweird.f32 %v839
    %vm847 = vmor %vm845, %vm846
    %v848 = vsel %vm847, %v839, %v844
    %v849 = vrsqrt.pop %v828
    %v850 = vmul.f32 %v849, %v828
    %v851 = vmul.f32 %v850, %v849
    %v852 = vmul.f32 0.5, %v851
    %v853 = vsub.f32 1.5, %v852
    %v854 = vmul.f32 %v849, %v853
    %vm855 = vweird.f32 %v828
    %vm856 = vweird.f32 %v849
    %vm857 = vmor %vm855, %vm856
    %v858 = vsel %vm857, %v849, %v854
    %v859 = vsub.f32 %v779, %v801
    %v860 = vsub.f32 %v782, %v802
    %v861 = vsub.f32 %v785, %v803
    %v862 = vmul.f32 %v859, %v838
    %v863 = vmul.f32 %v860, %v848
    %v864 = vmul.f32 %v861, %v858
    %v865 = vperm.slane %v142, 1
    %v866 = vmul.f32 %v862, %v865
    %v867 = vmul.f32 %v863, %v865
    %v868 = vmul.f32 %v864, %v865
    %v869 = vperm.slane %v142, 2
    %v870 = vadd.f32 %v866, %v869
    %v871 = vadd.f32 %v867, %v869
    %v872 = vadd.f32 %v868, %v869
    %v873 = vld [vmem:[%s6] sm:$0x1]
    %v874 = vld [vmem:[#allocation11] sm:$0xff]
    %v875 = vld [vmem:[#allocation11 + $0x8] sm:$0xff]
    %v876 = vld [vmem:[#allocation11 + $0x10] sm:$0xff]
    %v877 = vld [vmem:[#allocation11 + $0x18] sm:$0xff]
    %v878 = vld [vmem:[#allocation11 + $0x20] sm:$0xff]
    %v879 = vld [vmem:[#allocation11 + $0x28] sm:$0xff]
    %v880 = vld [vmem:[#allocation11 + $0x30] sm:$0xff]
    %v881 = vld [vmem:[#allocation11 + $0x38] sm:$0xff]
    %v882 = vld [vmem:[#allocation11 + $0x40] sm:$0xff]
    %v883 = vld [vmem:[#allocation11 + $0x48] sm:$0xff]
    %v884 = vld [vmem:[#allocation11 + $0x50] sm:$0xff]
    %v885 = vld [vmem:[#allocation11 + $0x58] sm:$0xff]
    %v886 = vld [vmem:[#allocation11 + $0x60] sm:$0xff]
    %v887 = vld [vmem:[#allocation11 + $0x68] sm:$0xff]
    %v888 = vld [vmem:[#allocation11 + $0x70] sm:$0xff]
    %v889 = vld [vmem:[#allocation11 + $0x78] sm:$0xff]
    %v891 = vperm.slane %v873, 0
    %893 = vmatpush.msra.mxu0 %v889
    %894 = vmatpush.msra.mxu0 %v888
    %895 = vmatpush.msra.mxu0 %v887
    %896 = vmatpush.msra.mxu0 %v886
    %897 = vmatpush.msra.mxu0 %v885
    %898 = vmatpush.msra.mxu0 %v884
    %899 = vmatpush.msra.mxu0 %v883
    %900 = vmatpush.msra.mxu0 %v882
    %901 = vmatpush.msra.mxu0 %v881
    %902 = vmatpush.msra.mxu0 %v880
    %903 = vmatpush.msra.mxu0 %v879
    %904 = vmatpush.msra.mxu0 %v878
    %905 = vmatpush.msra.mxu0 %v877
    %906 = vmatpush.msra.mxu0 %v876
    %907 = vmatpush.msra.mxu0 %v875
    %908 = vmatpush.msra.mxu0 %v874
    %909 = vmatmul.f32.gmra.mxu0 %v870
    %v910 = vpop.f32.mrf.mxu0
    %v911 = vadd.f32 %v891, %v910
    %912 = vmatmul.f32.gmra.mxu0 %v871
    %v913 = vpop.f32.mrf.mxu0
    %v914 = vadd.f32 %v891, %v913
    %915 = vmatmul.f32.gmra.mxu0 %v872
    %v916 = vpop.f32.mrf.mxu0
    %v917 = vadd.f32 %v891, %v916
    %918 = vdwg.mxu0
    %v919 = vmul.f32 %v911, 0.5
    %v920 = vmul.f32 %v914, 0.5
    %v921 = vmul.f32 %v917, 0.5
    %v922 = vmul.f32 %v911, 0.70710677
    %v923 = vmul.f32 %v914, 0.70710677
    %v924 = vmul.f32 %v917, 0.70710677
    %v925 = vmul.f32 %v922, %v922
    %v926 = vmin.f32 16.0, %v925
    %v927 = vmul.f32 %v926, 2.1237322e-06
    %v928 = vadd.f32 %v927, 0.00028619796
    %v929 = vmul.f32 %v926, %v928
    %v930 = vadd.f32 %v929, 0.0036580483
    %v931 = vmul.f32 %v926, %v930
    %v932 = vadd.f32 %v931, 0.05243302
    %v933 = vmul.f32 %v926, %v932
    %v934 = vadd.f32 %v933, 0.18741608
    %v935 = vmul.f32 %v926, %v934
    %v936 = vadd.f32 %v935, 1.1283791
    %v937 = vmul.f32 %v922, %v936
    %v938 = vmul.f32 %v926, 3.8918573e-05
    %v939 = vadd.f32 %v938, 0.001143296
    %v940 = vmul.f32 %v926, %v939
    %v941 = vadd.f32 %v940, 0.014752088
    %v942 = vmul.f32 %v926, %v941
    %v943 = vadd.f32 %v942, 0.112945676
    %v944 = vmul.f32 %v926, %v943
    %v945 = vadd.f32 %v944, 0.4994258
    %v946 = vmul.f32 %v926, %v945
    %v947 = vadd.f32 %v946, 1.0
    %v948 = vrcp.pop %v947
    %v949 = vmul.f32 %v947, %v948
    %v950 = vsub.f32 1.0, %v949
    %v951 = vmul.f32 %v948, %v950
    %v952 = vadd.f32 %v948, %v951
    %vm953 = vweird.f32 %v947
    %vm954 = vweird.f32 %v948
    %vm955 = vmor %vm953, %vm954
    %v956 = vsel %vm955, %v948, %v952
    %v957 = vand.u32 2147483647, %v947
    %vm958 = vcmp.eq.f32.partialorder %v957, 8.507059e+37
    %v959 = vand.u32 %v947, 2147483648
    %v960 = vor.u32 1.1754944e-38, %v959
    %v961 = vsel %vm958, %v960, %v956
    %v962 = vmul.f32 %v937, %v961
    %v963 = vmin.f32 %v962, 1.0
    %v964 = vmax.f32 %v963, -1.0
    %v965 = vmul.f32 %v923, %v923
    %v966 = vmin.f32 16.0, %v965
    %v967 = vmul.f32 %v966, 2.1237322e-06
    %v968 = vadd.f32 %v967, 0.00028619796
    %v969 = vmul.f32 %v966, %v968
    %v970 = vadd.f32 %v969, 0.0036580483
    %v971 = vmul.f32 %v966, %v970
    %v972 = vadd.f32 %v971, 0.05243302
    %v973 = vmul.f32 %v966, %v972
    %v974 = vadd.f32 %v973, 0.18741608
    %v975 = vmul.f32 %v966, %v974
    %v976 = vadd.f32 %v975, 1.1283791
    %v977 = vmul.f32 %v923, %v976
    %v978 = vmul.f32 %v966, 3.8918573e-05
    %v979 = vadd.f32 %v978, 0.001143296
    %v980 = vmul.f32 %v966, %v979
    %v981 = vadd.f32 %v980, 0.014752088
    %v982 = vmul.f32 %v966, %v981
    %v983 = vadd.f32 %v982, 0.112945676
    %v984 = vmul.f32 %v966, %v983
    %v985 = vadd.f32 %v984, 0.4994258
    %v986 = vmul.f32 %v966, %v985
    %v987 = vadd.f32 %v986, 1.0
    %v988 = vrcp.pop %v987
    %v989 = vmul.f32 %v987, %v988
    %v990 = vsub.f32 1.0, %v989
    %v991 = vmul.f32 %v988, %v990
    %v992 = vadd.f32 %v988, %v991
    %vm993 = vweird.f32 %v987
    %vm994 = vweird.f32 %v988
    %vm995 = vmor %vm993, %vm994
    %v996 = vsel %vm995, %v988, %v992
    %v997 = vand.u32 2147483647, %v987
    %vm998 = vcmp.eq.f32.partialorder %v997, 8.507059e+37
    %v999 = vand.u32 %v987, 2147483648
    %v1000 = vor.u32 1.1754944e-38, %v999
    %v1001 = vsel %vm998, %v1000, %v996
    %v1002 = vmul.f32 %v977, %v1001
    %v1003 = vmin.f32 %v1002, 1.0
    %v1004 = vmax.f32 %v1003, -1.0
    %v1005 = vmul.f32 %v924, %v924
    %v1006 = vmin.f32 16.0, %v1005
    %v1007 = vmul.f32 %v1006, 2.1237322e-06
    %v1008 = vadd.f32 %v1007, 0.00028619796
    %v1009 = vmul.f32 %v1006, %v1008
    %v1010 = vadd.f32 %v1009, 0.0036580483
    %v1011 = vmul.f32 %v1006, %v1010
    %v1012 = vadd.f32 %v1011, 0.05243302
    %v1013 = vmul.f32 %v1006, %v1012
    %v1014 = vadd.f32 %v1013, 0.18741608
    %v1015 = vmul.f32 %v1006, %v1014
    %v1016 = vadd.f32 %v1015, 1.1283791
    %v1017 = vmul.f32 %v924, %v1016
    %v1018 = vmul.f32 %v1006, 3.8918573e-05
    %v1019 = vadd.f32 %v1018, 0.001143296
    %v1020 = vmul.f32 %v1006, %v1019
    %v1021 = vadd.f32 %v1020, 0.014752088
    %v1022 = vmul.f32 %v1006, %v1021
    %v1023 = vadd.f32 %v1022, 0.112945676
    %v1024 = vmul.f32 %v1006, %v1023
    %v1025 = vadd.f32 %v1024, 0.4994258
    %v1026 = vmul.f32 %v1006, %v1025
    %v1027 = vadd.f32 %v1026, 1.0
    %v1028 = vrcp.pop %v1027
    %v1029 = vmul.f32 %v1027, %v1028
    %v1030 = vsub.f32 1.0, %v1029
    %v1031 = vmul.f32 %v1028, %v1030
    %v1032 = vadd.f32 %v1028, %v1031
    %vm1033 = vweird.f32 %v1027
    %vm1034 = vweird.f32 %v1028
    %vm1035 = vmor %vm1033, %vm1034
    %v1036 = vsel %vm1035, %v1028, %v1032
    %v1037 = vand.u32 2147483647, %v1027
    %vm1038 = vcmp.eq.f32.partialorder %v1037, 8.507059e+37
    %v1039 = vand.u32 %v1027, 2147483648
    %v1040 = vor.u32 1.1754944e-38, %v1039
    %v1041 = vsel %vm1038, %v1040, %v1036
    %v1042 = vmul.f32 %v1017, %v1041
    %v1043 = vmin.f32 %v1042, 1.0
    %v1044 = vmax.f32 %v1043, -1.0
    %v1045 = vadd.f32 %v964, 1.0
    %v1046 = vadd.f32 %v1004, 1.0
    %v1047 = vadd.f32 %v1044, 1.0
    %v1048 = vmul.f32 %v919, %v1045
    %v1049 = vmul.f32 %v920, %v1046
    %v1050 = vmul.f32 %v921, %v1047
    %v1051 = vld [vmem:[#allocation13] sm:$0xff]
    %v1052 = vld [vmem:[#allocation13 + $0x8] sm:$0xff]
    %v1053 = vld [vmem:[#allocation13 + $0x10] sm:$0xff]
    %v1054 = vld [vmem:[#allocation13 + $0x18] sm:$0xff]
    %v1055 = vld [vmem:[#allocation13 + $0x20] sm:$0xff]
    %v1056 = vld [vmem:[#allocation13 + $0x28] sm:$0xff]
    %v1057 = vld [vmem:[#allocation13 + $0x30] sm:$0xff]
    %v1058 = vld [vmem:[#allocation13 + $0x38] sm:$0xff]
    %v1059 = vld [vmem:[#allocation13 + $0x40] sm:$0xff]
    %v1060 = vld [vmem:[#allocation13 + $0x48] sm:$0xff]
    %v1061 = vld [vmem:[#allocation13 + $0x50] sm:$0xff]
    %v1062 = vld [vmem:[#allocation13 + $0x58] sm:$0xff]
    %v1063 = vld [vmem:[#allocation13 + $0x60] sm:$0xff]
    %v1064 = vld [vmem:[#allocation13 + $0x68] sm:$0xff]
    %v1065 = vld [vmem:[#allocation13 + $0x70] sm:$0xff]
    %v1066 = vld [vmem:[#allocation13 + $0x78] sm:$0xff]
    %v1067 = vperm.slane %v142, 3
    %1068 = vmatpush.msra.mxu0 %v1066
    %1069 = vmatpush.msra.mxu0 %v1065
    %1070 = vmatpush.msra.mxu0 %v1064
    %1071 = vmatpush.msra.mxu0 %v1063
    %1072 = vmatpush.msra.mxu0 %v1062
    %1073 = vmatpush.msra.mxu0 %v1061
    %1074 = vmatpush.msra.mxu0 %v1060
    %1075 = vmatpush.msra.mxu0 %v1059
    %1076 = vmatpush.msra.mxu0 %v1058
    %1077 = vmatpush.msra.mxu0 %v1057
    %1078 = vmatpush.msra.mxu0 %v1056
    %1079 = vmatpush.msra.mxu0 %v1055
    %1080 = vmatpush.msra.mxu0 %v1054
    %1081 = vmatpush.msra.mxu0 %v1053
    %1082 = vmatpush.msra.mxu0 %v1052
    %1083 = vmatpush.msra.mxu0 %v1051
    %1084 = vmatmul.f32.gmra.mxu0 %v1048
    %v1085 = vpop.f32.mrf.mxu0
    %v1086 = vadd.f32 %v1067, %v1085
    %1087 = vmatmul.f32.gmra.mxu0 %v1049
    %v1088 = vpop.f32.mrf.mxu0
    %v1089 = vadd.f32 %v1067, %v1088
    %1090 = vmatmul.f32.gmra.mxu0 %v1050
    %v1091 = vpop.f32.mrf.mxu0
    %v1092 = vadd.f32 %v1067, %v1091
    %1093 = vdwg.mxu0
    %v1094 = vxor.u32 %v1086, 2147483648
    %v1095 = vxor.u32 %v1089, 2147483648
    %v1096 = vxor.u32 %v1092, 2147483648
    %v1097 = vmul.f32 %v1094, 1.442695
    %v1098 = vpow.pop %v1097
    %v1099 = vmul.f32 %v1095, 1.442695
    %v1100 = vpow.pop %v1099
    %v1101 = vmul.f32 %v1096, 1.442695
    %v1102 = vpow.pop %v1101
    %v1103 = vadd.f32 %v1098, 1.0
    %v1104 = vadd.f32 %v1100, 1.0
    %v1105 = vadd.f32 %v1102, 1.0
    %v1106 = vrcp.pop %v1103
    %v1107 = vmul.f32 %v1103, %v1106
    %v1108 = vsub.f32 1.0, %v1107
    %v1109 = vmul.f32 %v1106, %v1108
    %v1110 = vadd.f32 %v1106, %v1109
    %vm1111 = vweird.f32 %v1103
    %vm1112 = vweird.f32 %v1106
    %vm1113 = vmor %vm1111, %vm1112
    %v1114 = vsel %vm1113, %v1106, %v1110
    %v1115 = vand.u32 2147483647, %v1103
    %vm1116 = vcmp.eq.f32.partialorder %v1115, 8.507059e+37
    %v1117 = vand.u32 %v1103, 2147483648
    %v1118 = vor.u32 1.1754944e-38, %v1117
    %v1119 = vsel %vm1116, %v1118, %v1114
    %v1120 = vmul.f32 1.0, %v1119
    %v1121 = vrcp.pop %v1104
    %v1122 = vmul.f32 %v1104, %v1121
    %v1123 = vsub.f32 1.0, %v1122
    %v1124 = vmul.f32 %v1121, %v1123
    %v1125 = vadd.f32 %v1121, %v1124
    %vm1126 = vweird.f32 %v1104
    %vm1127 = vweird.f32 %v1121
    %vm1128 = vmor %vm1126, %vm1127
    %v1129 = vsel %vm1128, %v1121, %v1125
    %v1130 = vand.u32 2147483647, %v1104
    %vm1131 = vcmp.eq.f32.partialorder %v1130, 8.507059e+37
    %v1132 = vand.u32 %v1104, 2147483648
    %v1133 = vor.u32 1.1754944e-38, %v1132
    %v1134 = vsel %vm1131, %v1133, %v1129
    %v1135 = vmul.f32 1.0, %v1134
    %v1136 = vrcp.pop %v1105
    %v1137 = vmul.f32 %v1105, %v1136
    %v1138 = vsub.f32 1.0, %v1137
    %v1139 = vmul.f32 %v1136, %v1138
    %v1140 = vadd.f32 %v1136, %v1139
    %vm1141 = vweird.f32 %v1105
    %vm1142 = vweird.f32 %v1136
    %vm1143 = vmor %vm1141, %vm1142
    %v1144 = vsel %vm1143, %v1136, %v1140
    %v1145 = vand.u32 2147483647, %v1105
    %vm1146 = vcmp.eq.f32.partialorder %v1145, 8.507059e+37
    %v1147 = vand.u32 %v1105, 2147483648
    %v1148 = vor.u32 1.1754944e-38, %v1147
    %v1149 = vsel %vm1146, %v1148, %v1144
    %v1150 = vmul.f32 1.0, %v1149
    %v1151 = vmul.f32 %v870, %v1120
    %v1152 = vmul.f32 %v871, %v1135
    %v1153 = vmul.f32 %v872, %v1150
    %1154 = vst [vmem:[#allocation14] sm:$0xff] %v1151
    %1155 = vst [vmem:[#allocation14 + $0x8] sm:$0xff] %v1152
    %1156 = vst [vmem:[#allocation14 + $0x10] sm:$0xf] %v1153
    // Predicated region
    $region62: #{tpu_custom_call.1} parent=1 // pred_check
      _
    $region63: #{tpu_custom_call.1} parent=1 // pred_check_branch
      %1158 = sbr.rel (0) target = $region65
    $region64: #{tpu_custom_call.1} parent=1 // pred_region
      %1160 = vsyncadd [#allocation4], 0
      %s1161 = sshll.u32 [#allocation14], 4
      %s1162 = int_to_ptr.vmem [resolvable:$true] %s1161
      %s1163 = sshll.u32 %s8, 4
      %s1164 = int_to_ptr.hbm [resolvable:$true] %s1163
      %1169 = dma.vmem_to_hbm [thread:$0]  %s1162, 384, %s1164, [#allocation4], 128, 128, 8
    $region65: #{tpu_custom_call.1} parent=1 // pred_fallthru
      _
    // Predicated region
    $region66: #{tpu_custom_call.1} parent=1 // pred_check
      _
    $region67: #{tpu_custom_call.1} parent=1 // pred_check_branch
      %1171 = sbr.rel (0) target = $region69
    $region68: #{tpu_custom_call.1} parent=1 // pred_region
      %1173 = dma.done [#allocation4], 384
    $region69: #{tpu_custom_call.1} parent=1 // pred_fallthru
      _
    %1174 = vsyncpa [#allocation3], 1
    %1175 = vsyncpa [#allocation6], 1
    %1176 = vsyncpa [#allocation9], 1
    %1177 = vsyncpa [#allocation12], 1
    %1178 = vsyncpa [#allocation4], 1

// kernel: tpu_custom_call.1
$region0: #{tpu_custom_call.1}
  #allocation0 [shape = 'u32[]', space=smem, size = 0x4, offset = 0x4, fixed_abs, tag = 'smem constant byte address 0x4 - core index']
  #allocation1 [shape = 'u32[72,128]{1,0:T(1,128)}', space=vmem, size = 0x9000, scoped, tag = 'internal scratch']
  %s0 = inlined_call_operand.hbm [shape: f32[20,256], index: 0, kind: input, shape index: {}]
  %s1 = inlined_call_operand.hbm [shape: f32[256,256], index: 1, kind: input, shape index: {}]
  %s2 = inlined_call_operand.hbm [shape: f32[3,256], index: 2, kind: input, shape index: {}]
  %s3 = inlined_call_operand.hbm [shape: f32[256,128], index: 3, kind: input, shape index: {}]
  %s4 = inlined_call_operand.hbm [shape: f32[4,128], index: 4, kind: input, shape index: {}]
  %s5 = inlined_call_operand.hbm [shape: f32[128,128], index: 5, kind: input, shape index: {}]
  %s6 = inlined_call_operand.vmem [shape: f32[1,128], index: 6, kind: input, shape index: {}]
  %s7 = inlined_call_operand.hbm [shape: f32[128,128], index: 7, kind: input, shape index: {}]
  %s8 = inlined_call_operand.hbm [shape: f32[20,128], index: 8, kind: output, shape index: {}]
  %s9 = sld [smem:[#allocation0]]
  $region70: #{tpu_custom_call.1} parent=0
    _
  %s11 = ssub.s32 1, %s9
  %s12 = scalar_select 0, %s11, %s9
  $region1: #{tpu_custom_call.1} parent=0
    #allocation2 [shape = 'u8[24576]{0}', space=vmem, size = 0x6000, scoped, tag = 'input window, operand 0, single buffered']
    #allocation3 [shape = 's32[1]{0}', space=sflag, size = 0x4, scoped, tag = 'scoped memory for tpu_custom_call.1']
    #allocation4 [shape = 's32[1]{0}', space=sflag, size = 0x4, scoped, tag = 'scoped memory for tpu_custom_call.1']
    #allocation5 [shape = 'u8[262144]{0}', space=vmem, size = 0x40000, scoped, tag = 'input window, operand 1, single buffered']
    #allocation6 [shape = 's32[1]{0}', space=sflag, size = 0x4, scoped, tag = 'scoped memory for tpu_custom_call.1']
    #allocation7 [shape = 'u8[4096]{0}', space=vmem, size = 0x1000, scoped, tag = 'input window, operand 2, single buffered']
    #allocation8 [shape = 'u8[131072]{0}', space=vmem, size = 0x20000, scoped, tag = 'input window, operand 3, single buffered']
    #allocation9 [shape = 's32[1]{0}', space=sflag, size = 0x4, scoped, tag = 'scoped memory for tpu_custom_call.1']
    #allocation10 [shape = 'u8[2048]{0}', space=vmem, size = 0x800, scoped, tag = 'input window, operand 4, single buffered']
    #allocation11 [shape = 'u8[65536]{0}', space=vmem, size = 0x10000, scoped, tag = 'input window, operand 5, single buffered']
    #allocation12 [shape = 's32[1]{0}', space=sflag, size = 0x4, scoped, tag = 'scoped memory for tpu_custom_call.1']
    #allocation13 [shape = 'u8[65536]{0}', space=vmem, size = 0x10000, scoped, tag = 'input window, operand 7, single buffered']
    #allocation14 [shape = 'u8[12288]{0}', space=vmem, size = 0x3000, scoped, tag = 'output window, operand 0, single buffered']
    %13 = vsyncpa [#allocation3], 0
    %14 = vsyncpa [#allocation6], 0
    %15 = vsyncpa [#allocation9], 0
    %16 = vsyncpa [#allocation12], 0
    %17 = vsyncpa [#allocation4], 0
    // Predicated region
    $region2: #{tpu_custom_call.1} parent=1 // pred_check
      _
    $region3: #{tpu_custom_call.1} parent=1 // pred_check_branch
      %19 = sbr.rel (0) target = $region5
    $region4: #{tpu_custom_call.1} parent=1 // pred_region
      %21 = vsyncadd [#allocation3], 0
      %s22 = sshll.u32 %s0, 4
      %s23 = int_to_ptr.hbm [resolvable:$true] %s22
      %s24 = sshll.u32 [#allocation2], 4
      %s25 = int_to_ptr.vmem [resolvable:$true] %s24
      %30 = dma.hbm_to_vmem [thread:$0]  %s23, 768, %s25, [#allocation3], 256, 256, 16
    $region5: #{tpu_custom_call.1} parent=1 // pred_fallthru
      _
    // Predicated region
    $region6: #{tpu_custom_call.1} parent=1 // pred_check
      _
    $region7: #{tpu_custom_call.1} parent=1 // pred_check_branch
      %32 = sbr.rel (0) target = $region9
    $region8: #{tpu_custom_call.1} parent=1 // pred_region
      %34 = vsyncadd [#allocation6], 0
      %s35 = sshll.u32 %s1, 4
      %s36 = int_to_ptr.hbm [resolvable:$true] %s35
      %s37 = sshll.u32 [#allocation5], 4
      %s38 = int_to_ptr.vmem [resolvable:$true] %s37
      %43 = dma.hbm_to_vmem [thread:$0]  %s36, 8192, %s38, [#allocation6], 256, 256, 16
    $region9: #{tpu_custom_call.1} parent=1 // pred_fallthru
      _
    // Predicated region
    $region10: #{tpu_custom_call.1} parent=1 // pred_check
      _
    $region11: #{tpu_custom_call.1} parent=1 // pred_check_branch
      %45 = sbr.rel (0) target = $region13
    $region12: #{tpu_custom_call.1} parent=1 // pred_region
      %47 = vsyncadd [#allocation6], 0
      %s49 = sshll.u32 %s2, 4
      %s50 = int_to_ptr.hbm [resolvable:$true] %s49
      %s51 = sshll.u32 [#allocation7], 4
      %s52 = int_to_ptr.vmem [resolvable:$true] %s51
      %54 = dma.hbm_to_vmem [thread:$0]  %s50, 128, %s52, [#allocation6]
    $region13: #{tpu_custom_call.1} parent=1 // pred_fallthru
      _
    // Predicated region
    $region14: #{tpu_custom_call.1} parent=1 // pred_check
      _
    $region15: #{tpu_custom_call.1} parent=1 // pred_check_branch
      %56 = sbr.rel (0) target = $region17
    $region16: #{tpu_custom_call.1} parent=1 // pred_region
      %58 = vsyncadd [#allocation9], 0
      %s59 = sshll.u32 %s3, 4
      %s60 = int_to_ptr.hbm [resolvable:$true] %s59
      %s61 = sshll.u32 [#allocation8], 4
      %s62 = int_to_ptr.vmem [resolvable:$true] %s61
      %67 = dma.hbm_to_vmem [thread:$0]  %s60, 4096, %s62, [#allocation9], 128, 128, 8
    $region17: #{tpu_custom_call.1} parent=1 // pred_fallthru
      _
    // Predicated region
    $region18: #{tpu_custom_call.1} parent=1 // pred_check
      _
    $region19: #{tpu_custom_call.1} parent=1 // pred_check_branch
      %69 = sbr.rel (0) target = $region21
    $region20: #{tpu_custom_call.1} parent=1 // pred_region
      %71 = vsyncadd [#allocation9], 0
      %s73 = sshll.u32 %s4, 4
      %s74 = int_to_ptr.hbm [resolvable:$true] %s73
      %s75 = sshll.u32 [#allocation10], 4
      %s76 = int_to_ptr.vmem [resolvable:$true] %s75
      %78 = dma.hbm_to_vmem [thread:$0]  %s74, 64, %s76, [#allocation9]
    $region21: #{tpu_custom_call.1} parent=1 // pred_fallthru
      _
    // Predicated region
    $region22: #{tpu_custom_call.1} parent=1 // pred_check
      _
    $region23: #{tpu_custom_call.1} parent=1 // pred_check_branch
      %80 = sbr.rel (0) target = $region25
    $region24: #{tpu_custom_call.1} parent=1 // pred_region
      %82 = vsyncadd [#allocation12], 0
      %s83 = sshll.u32 %s5, 4
      %s84 = int_to_ptr.hbm [resolvable:$true] %s83
      %s85 = sshll.u32 [#allocation11], 4
      %s86 = int_to_ptr.vmem [resolvable:$true] %s85
      %91 = dma.hbm_to_vmem [thread:$0]  %s84, 2048, %s86, [#allocation12], 128, 128, 8
    $region25: #{tpu_custom_call.1} parent=1 // pred_fallthru
      _
    // Predicated region
    $region26: #{tpu_custom_call.1} parent=1 // pred_check
      _
    $region27: #{tpu_custom_call.1} parent=1 // pred_check_branch
      %93 = sbr.rel (0) target = $region29
    $region28: #{tpu_custom_call.1} parent=1 // pred_region
      _
    $region29: #{tpu_custom_call.1} parent=1 // pred_fallthru
      _
    // Predicated region
    $region30: #{tpu_custom_call.1} parent=1 // pred_check
      _
    $region31: #{tpu_custom_call.1} parent=1 // pred_check_branch
      %95 = sbr.rel (0) target = $region33
    $region32: #{tpu_custom_call.1} parent=1 // pred_region
      %97 = vsyncadd [#allocation12], 0
      %s98 = sshll.u32 %s7, 4
      %s99 = int_to_ptr.hbm [resolvable:$true] %s98
      %s100 = sshll.u32 [#allocation13], 4
      %s101 = int_to_ptr.vmem [resolvable:$true] %s100
      %106 = dma.hbm_to_vmem [thread:$0]  %s99, 2048, %s101, [#allocation12], 128, 128, 8
    $region33: #{tpu_custom_call.1} parent=1 // pred_fallthru
      _
    // Predicated region
    $region34: #{tpu_custom_call.1} parent=1 // pred_check
      _
    $region35: #{tpu_custom_call.1} parent=1 // pred_check_branch
      %108 = sbr.rel (0) target = $region37
    $region36: #{tpu_custom_call.1} parent=1 // pred_region
      %110 = dma.done [#allocation3], 768
    $region37: #{tpu_custom_call.1} parent=1 // pred_fallthru
      _
    // Predicated region
    $region38: #{tpu_custom_call.1} parent=1 // pred_check
      _
    $region39: #{tpu_custom_call.1} parent=1 // pred_check_branch
      %112 = sbr.rel (0) target = $region41
    $region40: #{tpu_custom_call.1} parent=1 // pred_region
      %114 = dma.done [#allocation6], 8192
    $region41: #{tpu_custom_call.1} parent=1 // pred_fallthru
      _
    // Predicated region
    $region42: #{tpu_custom_call.1} parent=1 // pred_check
      _
    $region43: #{tpu_custom_call.1} parent=1 // pred_check_branch
      %116 = sbr.rel (0) target = $region45
    $region44: #{tpu_custom_call.1} parent=1 // pred_region
      %118 = dma.done [#allocation6], 128
    $region45: #{tpu_custom_call.1} parent=1 // pred_fallthru
      _
    // Predicated region
    $region46: #{tpu_custom_call.1} parent=1 // pred_check
      _
    $region47: #{tpu_custom_call.1} parent=1 // pred_check_branch
      %120 = sbr.rel (0) target = $region49
    $region48: #{tpu_custom_call.1} parent=1 // pred_region
      %122 = dma.done [#allocation9], 4096
    $region49: #{tpu_custom_call.1} parent=1 // pred_fallthru
      _
    // Predicated region
    $region50: #{tpu_custom_call.1} parent=1 // pred_check
      _
    $region51: #{tpu_custom_call.1} parent=1 // pred_check_branch
      %124 = sbr.rel (0) target = $region53
    $region52: #{tpu_custom_call.1} parent=1 // pred_region
      %126 = dma.done [#allocation9], 64
    $region53: #{tpu_custom_call.1} parent=1 // pred_fallthru
      _
    // Predicated region
    $region54: #{tpu_custom_call.1} parent=1 // pred_check
      _
    $region55: #{tpu_custom_call.1} parent=1 // pred_check_branch
      %128 = sbr.rel (0) target = $region57
    $region56: #{tpu_custom_call.1} parent=1 // pred_region
      %130 = dma.done [#allocation12], 2048
    $region57: #{tpu_custom_call.1} parent=1 // pred_fallthru
      _
    // Predicated region
    $region58: #{tpu_custom_call.1} parent=1 // pred_check
      _
    $region59: #{tpu_custom_call.1} parent=1 // pred_check_branch
      %132 = sbr.rel (0) target = $region61
    $region60: #{tpu_custom_call.1} parent=1 // pred_region
      %134 = dma.done [#allocation12], 2048
    $region61: #{tpu_custom_call.1} parent=1 // pred_fallthru
      _
    %v135 = vld [vmem:[#allocation2] sm:$0xff]
    %v136 = vld [vmem:[#allocation2 + $0x8] sm:$0xff]
    %v137 = vld [vmem:[#allocation2 + $0x10] sm:$0xff]
    %v138 = vld [vmem:[#allocation2 + $0x18] sm:$0xff]
    %v139 = vld [vmem:[#allocation2 + $0x20] sm:$0xf]
    %v140 = vld [vmem:[#allocation2 + $0x28] sm:$0xf]
    %v141 = vld [vmem:[#allocation7] sm:$0x77]
    %v142 = vld [vmem:[#allocation10] sm:$0xf]
    %v143 = vld [vmem:[#allocation5] sm:$0xff]
    %v144 = vld [vmem:[#allocation5 + $0x8] sm:$0xff]
    %v145 = vld [vmem:[#allocation5 + $0x10] sm:$0xff]
    %v146 = vld [vmem:[#allocation5 + $0x18] sm:$0xff]
    %v147 = vld [vmem:[#allocation5 + $0x20] sm:$0xff]
    %v148 = vld [vmem:[#allocation5 + $0x28] sm:$0xff]
    %v149 = vld [vmem:[#allocation5 + $0x30] sm:$0xff]
    %v150 = vld [vmem:[#allocation5 + $0x38] sm:$0xff]
    %v151 = vld [vmem:[#allocation5 + $0x40] sm:$0xff]
    %v152 = vld [vmem:[#allocation5 + $0x48] sm:$0xff]
    %v153 = vld [vmem:[#allocation5 + $0x50] sm:$0xff]
    %v154 = vld [vmem:[#allocation5 + $0x58] sm:$0xff]
    %v155 = vld [vmem:[#allocation5 + $0x60] sm:$0xff]
    %v156 = vld [vmem:[#allocation5 + $0x68] sm:$0xff]
    %v157 = vld [vmem:[#allocation5 + $0x70] sm:$0xff]
    %v158 = vld [vmem:[#allocation5 + $0x78] sm:$0xff]
    %v159 = vld [vmem:[#allocation5 + $0x80] sm:$0xff]
    %v160 = vld [vmem:[#allocation5 + $0x88] sm:$0xff]
    %v161 = vld [vmem:[#allocation5 + $0x90] sm:$0xff]
    %v162 = vld [vmem:[#allocation5 + $0x98] sm:$0xff]
    %v163 = vld [vmem:[#allocation5 + $0xa0] sm:$0xff]
    %v164 = vld [vmem:[#allocation5 + $0xa8] sm:$0xff]
    %v165 = vld [vmem:[#allocation5 + $0xb0] sm:$0xff]
    %v166 = vld [vmem:[#allocation5 + $0xb8] sm:$0xff]
    %v167 = vld [vmem:[#allocation5 + $0xc0] sm:$0xff]
    %v168 = vld [vmem:[#allocation5 + $0xc8] sm:$0xff]
    %v169 = vld [vmem:[#allocation5 + $0xd0] sm:$0xff]
    %v170 = vld [vmem:[#allocation5 + $0xd8] sm:$0xff]
    %v171 = vld [vmem:[#allocation5 + $0xe0] sm:$0xff]
    %v172 = vld [vmem:[#allocation5 + $0xe8] sm:$0xff]
    %v173 = vld [vmem:[#allocation5 + $0xf0] sm:$0xff]
    %v174 = vld [vmem:[#allocation5 + $0xf8] sm:$0xff]
    %v175 = vld [vmem:[#allocation5 + $0x100] sm:$0xff]
    %v176 = vld [vmem:[#allocation5 + $0x108] sm:$0xff]
    %v177 = vld [vmem:[#allocation5 + $0x110] sm:$0xff]
    %v178 = vld [vmem:[#allocation5 + $0x118] sm:$0xff]
    %v179 = vld [vmem:[#allocation5 + $0x120] sm:$0xff]
    %v180 = vld [vmem:[#allocation5 + $0x128] sm:$0xff]
    %v181 = vld [vmem:[#allocation5 + $0x130] sm:$0xff]
    %v182 = vld [vmem:[#allocation5 + $0x138] sm:$0xff]
    %v183 = vld [vmem:[#allocation5 + $0x140] sm:$0xff]
    %v184 = vld [vmem:[#allocation5 + $0x148] sm:$0xff]
    %v185 = vld [vmem:[#allocation5 + $0x150] sm:$0xff]
    %v186 = vld [vmem:[#allocation5 + $0x158] sm:$0xff]
    %v187 = vld [vmem:[#allocation5 + $0x160] sm:$0xff]
    %v188 = vld [vmem:[#allocation5 + $0x168] sm:$0xff]
    %v189 = vld [vmem:[#allocation5 + $0x170] sm:$0xff]
    %v190 = vld [vmem:[#allocation5 + $0x178] sm:$0xff]
    %v191 = vld [vmem:[#allocation5 + $0x180] sm:$0xff]
    %v192 = vld [vmem:[#allocation5 + $0x188] sm:$0xff]
    %v193 = vld [vmem:[#allocation5 + $0x190] sm:$0xff]
    %v194 = vld [vmem:[#allocation5 + $0x198] sm:$0xff]
    %v195 = vld [vmem:[#allocation5 + $0x1a0] sm:$0xff]
    %v196 = vld [vmem:[#allocation5 + $0x1a8] sm:$0xff]
    %v197 = vld [vmem:[#allocation5 + $0x1b0] sm:$0xff]
    %v198 = vld [vmem:[#allocation5 + $0x1b8] sm:$0xff]
    %v199 = vld [vmem:[#allocation5 + $0x1c0] sm:$0xff]
    %v200 = vld [vmem:[#allocation5 + $0x1c8] sm:$0xff]
    %v201 = vld [vmem:[#allocation5 + $0x1d0] sm:$0xff]
    %v202 = vld [vmem:[#allocation5 + $0x1d8] sm:$0xff]
    %v203 = vld [vmem:[#allocation5 + $0x1e0] sm:$0xff]
    %v204 = vld [vmem:[#allocation5 + $0x1e8] sm:$0xff]
    %v205 = vld [vmem:[#allocation5 + $0x1f0] sm:$0xff]
    %v206 = vld [vmem:[#allocation5 + $0x1f8] sm:$0xff]
    %v208 = vperm.slane %v141, 0
    %v209 = vperm.slane %v141, 4
    %v212 = vperm.slane %v208, 0
    %v213 = vperm.slane %v209, 0
    %214 = vmatpush.msra.mxu0 %v173
    %215 = vmatpush.msra.mxu0 %v171
    %216 = vmatpush.msra.mxu0 %v169
    %217 = vmatpush.msra.mxu0 %v167
    %218 = vmatpush.msra.mxu0 %v165
    %219 = vmatpush.msra.mxu0 %v163
    %220 = vmatpush.msra.mxu0 %v161
    %221 = vmatpush.msra.mxu0 %v159
    %222 = vmatpush.msra.mxu0 %v157
    %223 = vmatpush.msra.mxu0 %v155
    %224 = vmatpush.msra.mxu0 %v153
    %225 = vmatpush.msra.mxu0 %v151
    %226 = vmatpush.msra.mxu0 %v149
    %227 = vmatpush.msra.mxu0 %v147
    %228 = vmatpush.msra.mxu0 %v145
    %229 = vmatpush.msra.mxu0 %v143
    %230 = vmatmul.f32.gmra.mxu0 %v135
    %v231 = vpop.f32.mrf.mxu0
    %v232 = vadd.f32 %v212, %v231
    %233 = vmatmul.f32.gmra.mxu0 %v137
    %v234 = vpop.f32.mrf.mxu0
    %v235 = vadd.f32 %v212, %v234
    %236 = vmatmul.f32.gmra.mxu0 %v139
    %v237 = vpop.f32.mrf.mxu0
    %v238 = vadd.f32 %v212, %v237
    %239 = vdwg.mxu0
    %240 = vmatpush.msra.mxu0 %v205
    %241 = vmatpush.msra.mxu0 %v203
    %242 = vmatpush.msra.mxu0 %v201
    %243 = vmatpush.msra.mxu0 %v199
    %244 = vmatpush.msra.mxu0 %v197
    %245 = vmatpush.msra.mxu0 %v195
    %246 = vmatpush.msra.mxu0 %v193
    %247 = vmatpush.msra.mxu0 %v191
    %248 = vmatpush.msra.mxu0 %v189
    %249 = vmatpush.msra.mxu0 %v187
    %250 = vmatpush.msra.mxu0 %v185
    %251 = vmatpush.msra.mxu0 %v183
    %252 = vmatpush.msra.mxu0 %v181
    %253 = vmatpush.msra.mxu0 %v179
    %254 = vmatpush.msra.mxu0 %v177
    %255 = vmatpush.msra.mxu0 %v175
    %256 = vmatmul.f32.gmra.mxu0 %v136
    %v257 = vpop.f32.mrf.mxu0
    %v258 = vadd.f32 %v232, %v257
    %259 = vmatmul.f32.gmra.mxu0 %v138
    %v260 = vpop.f32.mrf.mxu0
    %v261 = vadd.f32 %v235, %v260
    %262 = vmatmul.f32.gmra.mxu0 %v140
    %v263 = vpop.f32.mrf.mxu0
    %v264 = vadd.f32 %v238, %v263
    %265 = vdwg.mxu0
    %266 = vmatpush.msra.mxu0 %v174
    %267 = vmatpush.msra.mxu0 %v172
    %268 = vmatpush.msra.mxu0 %v170
    %269 = vmatpush.msra.mxu0 %v168
    %270 = vmatpush.msra.mxu0 %v166
    %271 = vmatpush.msra.mxu0 %v164
    %272 = vmatpush.msra.mxu0 %v162
    %273 = vmatpush.msra.mxu0 %v160
    %274 = vmatpush.msra.mxu0 %v158
    %275 = vmatpush.msra.mxu0 %v156
    %276 = vmatpush.msra.mxu0 %v154
    %277 = vmatpush.msra.mxu0 %v152
    %278 = vmatpush.msra.mxu0 %v150
    %279 = vmatpush.msra.mxu0 %v148
    %280 = vmatpush.msra.mxu0 %v146
    %281 = vmatpush.msra.mxu0 %v144
    %282 = vmatmul.f32.gmra.mxu0 %v135
    %v283 = vpop.f32.mrf.mxu0
    %v284 = vadd.f32 %v213, %v283
    %285 = vmatmul.f32.gmra.mxu0 %v137
    %v286 = vpop.f32.mrf.mxu0
    %v287 = vadd.f32 %v213, %v286
    %288 = vmatmul.f32.gmra.mxu0 %v139
    %v289 = vpop.f32.mrf.mxu0
    %v290 = vadd.f32 %v213, %v289
    %291 = vdwg.mxu0
    %292 = vmatpush.msra.mxu0 %v206
    %293 = vmatpush.msra.mxu0 %v204
    %294 = vmatpush.msra.mxu0 %v202
    %295 = vmatpush.msra.mxu0 %v200
    %296 = vmatpush.msra.mxu0 %v198
    %297 = vmatpush.msra.mxu0 %v196
    %298 = vmatpush.msra.mxu0 %v194
    %299 = vmatpush.msra.mxu0 %v192
    %300 = vmatpush.msra.mxu0 %v190
    %301 = vmatpush.msra.mxu0 %v188
    %302 = vmatpush.msra.mxu0 %v186
    %303 = vmatpush.msra.mxu0 %v184
    %304 = vmatpush.msra.mxu0 %v182
    %305 = vmatpush.msra.mxu0 %v180
    %306 = vmatpush.msra.mxu0 %v178
    %307 = vmatpush.msra.mxu0 %v176
    %308 = vmatmul.f32.gmra.mxu0 %v136
    %v309 = vpop.f32.mrf.mxu0
    %v310 = vadd.f32 %v284, %v309
    %311 = vmatmul.f32.gmra.mxu0 %v138
    %v312 = vpop.f32.mrf.mxu0
    %v313 = vadd.f32 %v287, %v312
    %314 = vmatmul.f32.gmra.mxu0 %v140
    %v315 = vpop.f32.mrf.mxu0
    %v316 = vadd.f32 %v290, %v315
    %317 = vdwg.mxu0
    %v318 = vadd.f32 %v258, %v310
    %319 = vadd.xlane.f32.xlu0 %v318
    %v320 = vpop.xlane.xlu0 %319
    %v321 = vadd.f32 %v261, %v313
    %322 = vadd.xlane.f32.xlu0 %v321
    %v323 = vpop.xlane.xlu0 %322
    %vm324 = vcmask 1043456
    %v325 = vsel %vm324, %v264, 0.0
    %v326 = vsel %vm324, %v316, 0.0
    %v327 = vadd.f32 %v325, %v326
    %328 = vadd.xlane.f32.xlu0 %v327
    %v329 = vpop.xlane.xlu0 %328
    %v330 = vrcp.pop 256.0
    %v331 = vmul.f32 256.0, %v330
    %v332 = vsub.f32 1.0, %v331
    %v333 = vmul.f32 %v330, %v332
    %v334 = vadd.f32 %v330, %v333
    %vm335 = vweird.f32 %v330
    %v336 = vsel %vm335, %v330, %v334
    %v337 = vmul.f32 %v320, %v336
    %v338 = vmul.f32 %v323, %v336
    %v339 = vmul.f32 %v329, %v336
    %v340 = vmul.f32 %v258, %v258
    %v341 = vmul.f32 %v310, %v310
    %v342 = vmul.f32 %v261, %v261
    %v343 = vmul.f32 %v313, %v313
    %v344 = vmul.f32 %v264, %v264
    %v345 = vmul.f32 %v316, %v316
    %v346 = vadd.f32 %v340, %v341
    %347 = vadd.xlane.f32.xlu0 %v346
    %v348 = vpop.xlane.xlu0 %347
    %v349 = vadd.f32 %v342, %v343
    %350 = vadd.xlane.f32.xlu0 %v349
    %v351 = vpop.xlane.xlu0 %350
    %v352 = vsel %vm324, %v344, 0.0
    %v353 = vsel %vm324, %v345, 0.0
    %v354 = vadd.f32 %v352, %v353
    %355 = vadd.xlane.f32.xlu0 %v354
    %v356 = vpop.xlane.xlu0 %355
    %v357 = vmul.f32 %v348, %v336
    %v358 = vmul.f32 %v351, %v336
    %v359 = vmul.f32 %v356, %v336
    %v360 = vmul.f32 %v337, %v337
    %v361 = vmul.f32 %v338, %v338
    %v362 = vmul.f32 %v339, %v339
    %v363 = vsub.f32 %v357, %v360
    %v364 = vsub.f32 %v358, %v361
    %v365 = vsub.f32 %v359, %v362
    %v366 = vmax.f32 %v363, 0.0
    %v367 = vmax.f32 %v364, 0.0
    %v368 = vmax.f32 %v365, 0.0
    %v369 = vadd.f32 %v366, 1e-05
    %v370 = vadd.f32 %v367, 1e-05
    %v371 = vadd.f32 %v368, 1e-05
    %v372 = vrsqrt.pop %v369
    %v373 = vmul.f32 %v372, %v369
    %v374 = vmul.f32 %v373, %v372
    %v375 = vmul.f32 0.5, %v374
    %v376 = vsub.f32 1.5, %v375
    %v377 = vmul.f32 %v372, %v376
    %vm378 = vweird.f32 %v369
    %vm379 = vweird.f32 %v372
    %vm380 = vmor %vm378, %vm379
    %v381 = vsel %vm380, %v372, %v377
    %v382 = vrsqrt.pop %v370
    %v383 = vmul.f32 %v382, %v370
    %v384 = vmul.f32 %v383, %v382
    %v385 = vmul.f32 0.5, %v384
    %v386 = vsub.f32 1.5, %v385
    %v387 = vmul.f32 %v382, %v386
    %vm388 = vweird.f32 %v370
    %vm389 = vweird.f32 %v382
    %vm390 = vmor %vm388, %vm389
    %v391 = vsel %vm390, %v382, %v387
    %v392 = vrsqrt.pop %v371
    %v393 = vmul.f32 %v392, %v371
    %v394 = vmul.f32 %v393, %v392
    %v395 = vmul.f32 0.5, %v394
    %v396 = vsub.f32 1.5, %v395
    %v397 = vmul.f32 %v392, %v396
    %vm398 = vweird.f32 %v371
    %vm399 = vweird.f32 %v392
    %vm400 = vmor %vm398, %vm399
    %v401 = vsel %vm400, %v392, %v397
    %v402 = vsub.f32 %v258, %v337
    %v403 = vsub.f32 %v310, %v337
    %v404 = vsub.f32 %v261, %v338
    %v405 = vsub.f32 %v313, %v338
    %v406 = vsub.f32 %v264, %v339
    %v407 = vsub.f32 %v316, %v339
    %v408 = vmul.f32 %v402, %v381
    %v409 = vmul.f32 %v403, %v381
    %v410 = vmul.f32 %v404, %v391
    %v411 = vmul.f32 %v405, %v391
    %v412 = vmul.f32 %v406, %v401
    %v413 = vmul.f32 %v407, %v401
    %v414 = vperm.slane %v141, 1
    %v415 = vperm.slane %v141, 5
    %v418 = vperm.slane %v414, 1
    %v419 = vperm.slane %v415, 1
    %v420 = vmul.f32 %v408, %v418
    %v421 = vmul.f32 %v409, %v419
    %v422 = vmul.f32 %v410, %v418
    %v423 = vmul.f32 %v411, %v419
    %v424 = vmul.f32 %v412, %v418
    %v425 = vmul.f32 %v413, %v419
    %v426 = vperm.slane %v141, 2
    %v427 = vperm.slane %v141, 6
    %v430 = vperm.slane %v426, 2
    %v431 = vperm.slane %v427, 2
    %v432 = vadd.f32 %v420, %v430
    %v433 = vadd.f32 %v421, %v431
    %v434 = vadd.f32 %v422, %v430
    %v435 = vadd.f32 %v423, %v431
    %v436 = vadd.f32 %v424, %v430
    %v437 = vadd.f32 %v425, %v431
    %v438 = vmul.f32 %v432, 0.5
    %v439 = vmul.f32 %v433, 0.5
    %v440 = vmul.f32 %v434, 0.5
    %v441 = vmul.f32 %v435, 0.5
    %v442 = vmul.f32 %v436, 0.5
    %v443 = vmul.f32 %v437, 0.5
    %v444 = vmul.f32 %v432, 0.70710677
    %v445 = vmul.f32 %v433, 0.70710677
    %v446 = vmul.f32 %v434, 0.70710677
    %v447 = vmul.f32 %v435, 0.70710677
    %v448 = vmul.f32 %v436, 0.70710677
    %v449 = vmul.f32 %v437, 0.70710677
    %v450 = vmul.f32 %v444, %v444
    %v451 = vmin.f32 16.0, %v450
    %v452 = vmul.f32 %v451, 2.1237322e-06
    %v453 = vadd.f32 %v452, 0.00028619796
    %v454 = vmul.f32 %v451, %v453
    %v455 = vadd.f32 %v454, 0.0036580483
    %v456 = vmul.f32 %v451, %v455
    %v457 = vadd.f32 %v456, 0.05243302
    %v458 = vmul.f32 %v451, %v457
    %v459 = vadd.f32 %v458, 0.18741608
    %v460 = vmul.f32 %v451, %v459
    %v461 = vadd.f32 %v460, 1.1283791
    %v462 = vmul.f32 %v444, %v461
    %v463 = vmul.f32 %v451, 3.8918573e-05
    %v464 = vadd.f32 %v463, 0.001143296
    %v465 = vmul.f32 %v451, %v464
    %v466 = vadd.f32 %v465, 0.014752088
    %v467 = vmul.f32 %v451, %v466
    %v468 = vadd.f32 %v467, 0.112945676
    %v469 = vmul.f32 %v451, %v468
    %v470 = vadd.f32 %v469, 0.4994258
    %v471 = vmul.f32 %v451, %v470
    %v472 = vadd.f32 %v471, 1.0
    %v473 = vrcp.pop %v472
    %v474 = vmul.f32 %v472, %v473
    %v475 = vsub.f32 1.0, %v474
    %v476 = vmul.f32 %v473, %v475
    %v477 = vadd.f32 %v473, %v476
    %vm478 = vweird.f32 %v472
    %vm479 = vweird.f32 %v473
    %vm480 = vmor %vm478, %vm479
    %v481 = vsel %vm480, %v473, %v477
    %v482 = vand.u32 2147483647, %v472
    %vm483 = vcmp.eq.f32.partialorder %v482, 8.507059e+37
    %v484 = vand.u32 %v472, 2147483648
    %v485 = vor.u32 1.1754944e-38, %v484
    %v486 = vsel %vm483, %v485, %v481
    %v487 = vmul.f32 %v462, %v486
    %v488 = vmin.f32 %v487, 1.0
    %v489 = vmax.f32 %v488, -1.0
    %v490 = vmul.f32 %v445, %v445
    %v491 = vmin.f32 16.0, %v490
    %v492 = vmul.f32 %v491, 2.1237322e-06
    %v493 = vadd.f32 %v492, 0.00028619796
    %v494 = vmul.f32 %v491, %v493
    %v495 = vadd.f32 %v494, 0.0036580483
    %v496 = vmul.f32 %v491, %v495
    %v497 = vadd.f32 %v496, 0.05243302
    %v498 = vmul.f32 %v491, %v497
    %v499 = vadd.f32 %v498, 0.18741608
    %v500 = vmul.f32 %v491, %v499
    %v501 = vadd.f32 %v500, 1.1283791
    %v502 = vmul.f32 %v445, %v501
    %v503 = vmul.f32 %v491, 3.8918573e-05
    %v504 = vadd.f32 %v503, 0.001143296
    %v505 = vmul.f32 %v491, %v504
    %v506 = vadd.f32 %v505, 0.014752088
    %v507 = vmul.f32 %v491, %v506
    %v508 = vadd.f32 %v507, 0.112945676
    %v509 = vmul.f32 %v491, %v508
    %v510 = vadd.f32 %v509, 0.4994258
    %v511 = vmul.f32 %v491, %v510
    %v512 = vadd.f32 %v511, 1.0
    %v513 = vrcp.pop %v512
    %v514 = vmul.f32 %v512, %v513
    %v515 = vsub.f32 1.0, %v514
    %v516 = vmul.f32 %v513, %v515
    %v517 = vadd.f32 %v513, %v516
    %vm518 = vweird.f32 %v512
    %vm519 = vweird.f32 %v513
    %vm520 = vmor %vm518, %vm519
    %v521 = vsel %vm520, %v513, %v517
    %v522 = vand.u32 2147483647, %v512
    %vm523 = vcmp.eq.f32.partialorder %v522, 8.507059e+37
    %v524 = vand.u32 %v512, 2147483648
    %v525 = vor.u32 1.1754944e-38, %v524
    %v526 = vsel %vm523, %v525, %v521
    %v527 = vmul.f32 %v502, %v526
    %v528 = vmin.f32 %v527, 1.0
    %v529 = vmax.f32 %v528, -1.0
    %v530 = vmul.f32 %v446, %v446
    %v531 = vmin.f32 16.0, %v530
    %v532 = vmul.f32 %v531, 2.1237322e-06
    %v533 = vadd.f32 %v532, 0.00028619796
    %v534 = vmul.f32 %v531, %v533
    %v535 = vadd.f32 %v534, 0.0036580483
    %v536 = vmul.f32 %v531, %v535
    %v537 = vadd.f32 %v536, 0.05243302
    %v538 = vmul.f32 %v531, %v537
    %v539 = vadd.f32 %v538, 0.18741608
    %v540 = vmul.f32 %v531, %v539
    %v541 = vadd.f32 %v540, 1.1283791
    %v542 = vmul.f32 %v446, %v541
    %v543 = vmul.f32 %v531, 3.8918573e-05
    %v544 = vadd.f32 %v543, 0.001143296
    %v545 = vmul.f32 %v531, %v544
    %v546 = vadd.f32 %v545, 0.014752088
    %v547 = vmul.f32 %v531, %v546
    %v548 = vadd.f32 %v547, 0.112945676
    %v549 = vmul.f32 %v531, %v548
    %v550 = vadd.f32 %v549, 0.4994258
    %v551 = vmul.f32 %v531, %v550
    %v552 = vadd.f32 %v551, 1.0
    %v553 = vrcp.pop %v552
    %v554 = vmul.f32 %v552, %v553
    %v555 = vsub.f32 1.0, %v554
    %v556 = vmul.f32 %v553, %v555
    %v557 = vadd.f32 %v553, %v556
    %vm558 = vweird.f32 %v552
    %vm559 = vweird.f32 %v553
    %vm560 = vmor %vm558, %vm559
    %v561 = vsel %vm560, %v553, %v557
    %v562 = vand.u32 2147483647, %v552
    %vm563 = vcmp.eq.f32.partialorder %v562, 8.507059e+37
    %v564 = vand.u32 %v552, 2147483648
    %v565 = vor.u32 1.1754944e-38, %v564
    %v566 = vsel %vm563, %v565, %v561
    %v567 = vmul.f32 %v542, %v566
    %v568 = vmin.f32 %v567, 1.0
    %v569 = vmax.f32 %v568, -1.0
    %v570 = vmul.f32 %v447, %v447
    %v571 = vmin.f32 16.0, %v570
    %v572 = vmul.f32 %v571, 2.1237322e-06
    %v573 = vadd.f32 %v572, 0.00028619796
    %v574 = vmul.f32 %v571, %v573
    %v575 = vadd.f32 %v574, 0.0036580483
    %v576 = vmul.f32 %v571, %v575
    %v577 = vadd.f32 %v576, 0.05243302
    %v578 = vmul.f32 %v571, %v577
    %v579 = vadd.f32 %v578, 0.18741608
    %v580 = vmul.f32 %v571, %v579
    %v581 = vadd.f32 %v580, 1.1283791
    %v582 = vmul.f32 %v447, %v581
    %v583 = vmul.f32 %v571, 3.8918573e-05
    %v584 = vadd.f32 %v583, 0.001143296
    %v585 = vmul.f32 %v571, %v584
    %v586 = vadd.f32 %v585, 0.014752088
    %v587 = vmul.f32 %v571, %v586
    %v588 = vadd.f32 %v587, 0.112945676
    %v589 = vmul.f32 %v571, %v588
    %v590 = vadd.f32 %v589, 0.4994258
    %v591 = vmul.f32 %v571, %v590
    %v592 = vadd.f32 %v591, 1.0
    %v593 = vrcp.pop %v592
    %v594 = vmul.f32 %v592, %v593
    %v595 = vsub.f32 1.0, %v594
    %v596 = vmul.f32 %v593, %v595
    %v597 = vadd.f32 %v593, %v596
    %vm598 = vweird.f32 %v592
    %vm599 = vweird.f32 %v593
    %vm600 = vmor %vm598, %vm599
    %v601 = vsel %vm600, %v593, %v597
    %v602 = vand.u32 2147483647, %v592
    %vm603 = vcmp.eq.f32.partialorder %v602, 8.507059e+37
    %v604 = vand.u32 %v592, 2147483648
    %v605 = vor.u32 1.1754944e-38, %v604
    %v606 = vsel %vm603, %v605, %v601
    %v607 = vmul.f32 %v582, %v606
    %v608 = vmin.f32 %v607, 1.0
    %v609 = vmax.f32 %v608, -1.0
    %v610 = vmul.f32 %v448, %v448
    %v611 = vmin.f32 16.0, %v610
    %v612 = vmul.f32 %v611, 2.1237322e-06
    %v613 = vadd.f32 %v612, 0.00028619796
    %v614 = vmul.f32 %v611, %v613
    %v615 = vadd.f32 %v614, 0.0036580483
    %v616 = vmul.f32 %v611, %v615
    %v617 = vadd.f32 %v616, 0.05243302
    %v618 = vmul.f32 %v611, %v617
    %v619 = vadd.f32 %v618, 0.18741608
    %v620 = vmul.f32 %v611, %v619
    %v621 = vadd.f32 %v620, 1.1283791
    %v622 = vmul.f32 %v448, %v621
    %v623 = vmul.f32 %v611, 3.8918573e-05
    %v624 = vadd.f32 %v623, 0.001143296
    %v625 = vmul.f32 %v611, %v624
    %v626 = vadd.f32 %v625, 0.014752088
    %v627 = vmul.f32 %v611, %v626
    %v628 = vadd.f32 %v627, 0.112945676
    %v629 = vmul.f32 %v611, %v628
    %v630 = vadd.f32 %v629, 0.4994258
    %v631 = vmul.f32 %v611, %v630
    %v632 = vadd.f32 %v631, 1.0
    %v633 = vrcp.pop %v632
    %v634 = vmul.f32 %v632, %v633
    %v635 = vsub.f32 1.0, %v634
    %v636 = vmul.f32 %v633, %v635
    %v637 = vadd.f32 %v633, %v636
    %vm638 = vweird.f32 %v632
    %vm639 = vweird.f32 %v633
    %vm640 = vmor %vm638, %vm639
    %v641 = vsel %vm640, %v633, %v637
    %v642 = vand.u32 2147483647, %v632
    %vm643 = vcmp.eq.f32.partialorder %v642, 8.507059e+37
    %v644 = vand.u32 %v632, 2147483648
    %v645 = vor.u32 1.1754944e-38, %v644
    %v646 = vsel %vm643, %v645, %v641
    %v647 = vmul.f32 %v622, %v646
    %v648 = vmin.f32 %v647, 1.0
    %v649 = vmax.f32 %v648, -1.0
    %v650 = vmul.f32 %v449, %v449
    %v651 = vmin.f32 16.0, %v650
    %v652 = vmul.f32 %v651, 2.1237322e-06
    %v653 = vadd.f32 %v652, 0.00028619796
    %v654 = vmul.f32 %v651, %v653
    %v655 = vadd.f32 %v654, 0.0036580483
    %v656 = vmul.f32 %v651, %v655
    %v657 = vadd.f32 %v656, 0.05243302
    %v658 = vmul.f32 %v651, %v657
    %v659 = vadd.f32 %v658, 0.18741608
    %v660 = vmul.f32 %v651, %v659
    %v661 = vadd.f32 %v660, 1.1283791
    %v662 = vmul.f32 %v449, %v661
    %v663 = vmul.f32 %v651, 3.8918573e-05
    %v664 = vadd.f32 %v663, 0.001143296
    %v665 = vmul.f32 %v651, %v664
    %v666 = vadd.f32 %v665, 0.014752088
    %v667 = vmul.f32 %v651, %v666
    %v668 = vadd.f32 %v667, 0.112945676
    %v669 = vmul.f32 %v651, %v668
    %v670 = vadd.f32 %v669, 0.4994258
    %v671 = vmul.f32 %v651, %v670
    %v672 = vadd.f32 %v671, 1.0
    %v673 = vrcp.pop %v672
    %v674 = vmul.f32 %v672, %v673
    %v675 = vsub.f32 1.0, %v674
    %v676 = vmul.f32 %v673, %v675
    %v677 = vadd.f32 %v673, %v676
    %vm678 = vweird.f32 %v672
    %vm679 = vweird.f32 %v673
    %vm680 = vmor %vm678, %vm679
    %v681 = vsel %vm680, %v673, %v677
    %v682 = vand.u32 2147483647, %v672
    %vm683 = vcmp.eq.f32.partialorder %v682, 8.507059e+37
    %v684 = vand.u32 %v672, 2147483648
    %v685 = vor.u32 1.1754944e-38, %v684
    %v686 = vsel %vm683, %v685, %v681
    %v687 = vmul.f32 %v662, %v686
    %v688 = vmin.f32 %v687, 1.0
    %v689 = vmax.f32 %v688, -1.0
    %v690 = vadd.f32 %v489, 1.0
    %v691 = vadd.f32 %v529, 1.0
    %v692 = vadd.f32 %v569, 1.0
    %v693 = vadd.f32 %v609, 1.0
    %v694 = vadd.f32 %v649, 1.0
    %v695 = vadd.f32 %v689, 1.0
    %v696 = vmul.f32 %v438, %v690
    %v697 = vmul.f32 %v439, %v691
    %v698 = vmul.f32 %v440, %v692
    %v699 = vmul.f32 %v441, %v693
    %v700 = vmul.f32 %v442, %v694
    %v701 = vmul.f32 %v443, %v695
    %v702 = vld [vmem:[#allocation8] sm:$0xff]
    %v703 = vld [vmem:[#allocation8 + $0x8] sm:$0xff]
    %v704 = vld [vmem:[#allocation8 + $0x10] sm:$0xff]
    %v705 = vld [vmem:[#allocation8 + $0x18] sm:$0xff]
    %v706 = vld [vmem:[#allocation8 + $0x20] sm:$0xff]
    %v707 = vld [vmem:[#allocation8 + $0x28] sm:$0xff]
    %v708 = vld [vmem:[#allocation8 + $0x30] sm:$0xff]
    %v709 = vld [vmem:[#allocation8 + $0x38] sm:$0xff]
    %v710 = vld [vmem:[#allocation8 + $0x40] sm:$0xff]
    %v711 = vld [vmem:[#allocation8 + $0x48] sm:$0xff]
    %v712 = vld [vmem:[#allocation8 + $0x50] sm:$0xff]
    %v713 = vld [vmem:[#allocation8 + $0x58] sm:$0xff]
    %v714 = vld [vmem:[#allocation8 + $0x60] sm:$0xff]
    %v715 = vld [vmem:[#allocation8 + $0x68] sm:$0xff]
    %v716 = vld [vmem:[#allocation8 + $0x70] sm:$0xff]
    %v717 = vld [vmem:[#allocation8 + $0x78] sm:$0xff]
    %v718 = vld [vmem:[#allocation8 + $0x80] sm:$0xff]
    %v719 = vld [vmem:[#allocation8 + $0x88] sm:$0xff]
    %v720 = vld [vmem:[#allocation8 + $0x90] sm:$0xff]
    %v721 = vld [vmem:[#allocation8 + $0x98] sm:$0xff]
    %v722 = vld [vmem:[#allocation8 + $0xa0] sm:$0xff]
    %v723 = vld [vmem:[#allocation8 + $0xa8] sm:$0xff]
    %v724 = vld [vmem:[#allocation8 + $0xb0] sm:$0xff]
    %v725 = vld [vmem:[#allocation8 + $0xb8] sm:$0xff]
    %v726 = vld [vmem:[#allocation8 + $0xc0] sm:$0xff]
    %v727 = vld [vmem:[#allocation8 + $0xc8] sm:$0xff]
    %v728 = vld [vmem:[#allocation8 + $0xd0] sm:$0xff]
    %v729 = vld [vmem:[#allocation8 + $0xd8] sm:$0xff]
    %v730 = vld [vmem:[#allocation8 + $0xe0] sm:$0xff]
    %v731 = vld [vmem:[#allocation8 + $0xe8] sm:$0xff]
    %v732 = vld [vmem:[#allocation8 + $0xf0] sm:$0xff]
    %v733 = vld [vmem:[#allocation8 + $0xf8] sm:$0xff]
    %v734 = vperm.slane %v142, 0
    %735 = vmatpush.msra.mxu0 %v717
    %736 = vmatpush.msra.mxu0 %v716
    %737 = vmatpush.msra.mxu0 %v715
    %738 = vmatpush.msra.mxu0 %v714
    %739 = vmatpush.msra.mxu0 %v713
    %740 = vmatpush.msra.mxu0 %v712
    %741 = vmatpush.msra.mxu0 %v711
    %742 = vmatpush.msra.mxu0 %v710
    %743 = vmatpush.msra.mxu0 %v709
    %744 = vmatpush.msra.mxu0 %v708
    %745 = vmatpush.msra.mxu0 %v707
    %746 = vmatpush.msra.mxu0 %v706
    %747 = vmatpush.msra.mxu0 %v705
    %748 = vmatpush.msra.mxu0 %v704
    %749 = vmatpush.msra.mxu0 %v703
    %750 = vmatpush.msra.mxu0 %v702
    %751 = vmatmul.f32.gmra.mxu0 %v696
    %v752 = vpop.f32.mrf.mxu0
    %v753 = vadd.f32 %v734, %v752
    %754 = vmatmul.f32.gmra.mxu0 %v698
    %v755 = vpop.f32.mrf.mxu0
    %v756 = vadd.f32 %v734, %v755
    %757 = vmatmul.f32.gmra.mxu0 %v700
    %v758 = vpop.f32.mrf.mxu0
    %v759 = vadd.f32 %v734, %v758
    %760 = vdwg.mxu0
    %761 = vmatpush.msra.mxu0 %v733
    %762 = vmatpush.msra.mxu0 %v732
    %763 = vmatpush.msra.mxu0 %v731
    %764 = vmatpush.msra.mxu0 %v730
    %765 = vmatpush.msra.mxu0 %v729
    %766 = vmatpush.msra.mxu0 %v728
    %767 = vmatpush.msra.mxu0 %v727
    %768 = vmatpush.msra.mxu0 %v726
    %769 = vmatpush.msra.mxu0 %v725
    %770 = vmatpush.msra.mxu0 %v724
    %771 = vmatpush.msra.mxu0 %v723
    %772 = vmatpush.msra.mxu0 %v722
    %773 = vmatpush.msra.mxu0 %v721
    %774 = vmatpush.msra.mxu0 %v720
    %775 = vmatpush.msra.mxu0 %v719
    %776 = vmatpush.msra.mxu0 %v718
    %777 = vmatmul.f32.gmra.mxu0 %v697
    %v778 = vpop.f32.mrf.mxu0
    %v779 = vadd.f32 %v753, %v778
    %780 = vmatmul.f32.gmra.mxu0 %v699
    %v781 = vpop.f32.mrf.mxu0
    %v782 = vadd.f32 %v756, %v781
    %783 = vmatmul.f32.gmra.mxu0 %v701
    %v784 = vpop.f32.mrf.mxu0
    %v785 = vadd.f32 %v759, %v784
    %786 = vdwg.mxu0
    %787 = vadd.xlane.f32.xlu0 %v779
    %v788 = vpop.xlane.xlu0 %787
    %789 = vadd.xlane.f32.xlu0 %v782
    %v790 = vpop.xlane.xlu0 %789
    %v791 = vsel %vm324, %v785, 0.0
    %792 = vadd.xlane.f32.xlu0 %v791
    %v793 = vpop.xlane.xlu0 %792
    %v794 = vrcp.pop 128.0
    %v795 = vmul.f32 128.0, %v794
    %v796 = vsub.f32 1.0, %v795
    %v797 = vmul.f32 %v794, %v796
    %v798 = vadd.f32 %v794, %v797
    %vm799 = vweird.f32 %v794
    %v800 = vsel %vm799, %v794, %v798
    %v801 = vmul.f32 %v788, %v800
    %v802 = vmul.f32 %v790, %v800
    %v803 = vmul.f32 %v793, %v800
    %v804 = vmul.f32 %v779, %v779
    %v805 = vmul.f32 %v782, %v782
    %v806 = vmul.f32 %v785, %v785
    %807 = vadd.xlane.f32.xlu0 %v804
    %v808 = vpop.xlane.xlu0 %807
    %809 = vadd.xlane.f32.xlu0 %v805
    %v810 = vpop.xlane.xlu0 %809
    %v811 = vsel %vm324, %v806, 0.0
    %812 = vadd.xlane.f32.xlu0 %v811
    %v813 = vpop.xlane.xlu0 %812
    %v814 = vmul.f32 %v808, %v800
    %v815 = vmul.f32 %v810, %v800
    %v816 = vmul.f32 %v813, %v800
    %v817 = vmul.f32 %v801, %v801
    %v818 = vmul.f32 %v802, %v802
    %v819 = vmul.f32 %v803, %v803
    %v820 = vsub.f32 %v814, %v817
    %v821 = vsub.f32 %v815, %v818
    %v822 = vsub.f32 %v816, %v819
    %v823 = vmax.f32 %v820, 0.0
    %v824 = vmax.f32 %v821, 0.0
    %v825 = vmax.f32 %v822, 0.0
    %v826 = vadd.f32 %v823, 1e-05
    %v827 = vadd.f32 %v824, 1e-05
    %v828 = vadd.f32 %v825, 1e-05
    %v829 = vrsqrt.pop %v826
    %v830 = vmul.f32 %v829, %v826
    %v831 = vmul.f32 %v830, %v829
    %v832 = vmul.f32 0.5, %v831
    %v833 = vsub.f32 1.5, %v832
    %v834 = vmul.f32 %v829, %v833
    %vm835 = vweird.f32 %v826
    %vm836 = vweird.f32 %v829
    %vm837 = vmor %vm835, %vm836
    %v838 = vsel %vm837, %v829, %v834
    %v839 = vrsqrt.pop %v827
    %v840 = vmul.f32 %v839, %v827
    %v841 = vmul.f32 %v840, %v839
    %v842 = vmul.f32 0.5, %v841
    %v843 = vsub.f32 1.5, %v842
    %v844 = vmul.f32 %v839, %v843
    %vm845 = vweird.f32 %v827
    %vm846 = vweird.f32 %v839
    %vm847 = vmor %vm845, %vm846
    %v848 = vsel %vm847, %v839, %v844
    %v849 = vrsqrt.pop %v828
    %v850 = vmul.f32 %v849, %v828
    %v851 = vmul.f32 %v850, %v849
    %v852 = vmul.f32 0.5, %v851
    %v853 = vsub.f32 1.5, %v852
    %v854 = vmul.f32 %v849, %v853
    %vm855 = vweird.f32 %v828
    %vm856 = vweird.f32 %v849
    %vm857 = vmor %vm855, %vm856
    %v858 = vsel %vm857, %v849, %v854
    %v859 = vsub.f32 %v779, %v801
    %v860 = vsub.f32 %v782, %v802
    %v861 = vsub.f32 %v785, %v803
    %v862 = vmul.f32 %v859, %v838
    %v863 = vmul.f32 %v860, %v848
    %v864 = vmul.f32 %v861, %v858
    %v865 = vperm.slane %v142, 1
    %v866 = vmul.f32 %v862, %v865
    %v867 = vmul.f32 %v863, %v865
    %v868 = vmul.f32 %v864, %v865
    %v869 = vperm.slane %v142, 2
    %v870 = vadd.f32 %v866, %v869
    %v871 = vadd.f32 %v867, %v869
    %v872 = vadd.f32 %v868, %v869
    %v873 = vld [vmem:[%s6] sm:$0x1]
    %v874 = vld [vmem:[#allocation11] sm:$0xff]
    %v875 = vld [vmem:[#allocation11 + $0x8] sm:$0xff]
    %v876 = vld [vmem:[#allocation11 + $0x10] sm:$0xff]
    %v877 = vld [vmem:[#allocation11 + $0x18] sm:$0xff]
    %v878 = vld [vmem:[#allocation11 + $0x20] sm:$0xff]
    %v879 = vld [vmem:[#allocation11 + $0x28] sm:$0xff]
    %v880 = vld [vmem:[#allocation11 + $0x30] sm:$0xff]
    %v881 = vld [vmem:[#allocation11 + $0x38] sm:$0xff]
    %v882 = vld [vmem:[#allocation11 + $0x40] sm:$0xff]
    %v883 = vld [vmem:[#allocation11 + $0x48] sm:$0xff]
    %v884 = vld [vmem:[#allocation11 + $0x50] sm:$0xff]
    %v885 = vld [vmem:[#allocation11 + $0x58] sm:$0xff]
    %v886 = vld [vmem:[#allocation11 + $0x60] sm:$0xff]
    %v887 = vld [vmem:[#allocation11 + $0x68] sm:$0xff]
    %v888 = vld [vmem:[#allocation11 + $0x70] sm:$0xff]
    %v889 = vld [vmem:[#allocation11 + $0x78] sm:$0xff]
    %v891 = vperm.slane %v873, 0
    %893 = vmatpush.msra.mxu0 %v889
    %894 = vmatpush.msra.mxu0 %v888
    %895 = vmatpush.msra.mxu0 %v887
    %896 = vmatpush.msra.mxu0 %v886
    %897 = vmatpush.msra.mxu0 %v885
    %898 = vmatpush.msra.mxu0 %v884
    %899 = vmatpush.msra.mxu0 %v883
    %900 = vmatpush.msra.mxu0 %v882
    %901 = vmatpush.msra.mxu0 %v881
    %902 = vmatpush.msra.mxu0 %v880
    %903 = vmatpush.msra.mxu0 %v879
    %904 = vmatpush.msra.mxu0 %v878
    %905 = vmatpush.msra.mxu0 %v877
    %906 = vmatpush.msra.mxu0 %v876
    %907 = vmatpush.msra.mxu0 %v875
    %908 = vmatpush.msra.mxu0 %v874
    %909 = vmatmul.f32.gmra.mxu0 %v870
    %v910 = vpop.f32.mrf.mxu0
    %v911 = vadd.f32 %v891, %v910
    %912 = vmatmul.f32.gmra.mxu0 %v871
    %v913 = vpop.f32.mrf.mxu0
    %v914 = vadd.f32 %v891, %v913
    %915 = vmatmul.f32.gmra.mxu0 %v872
    %v916 = vpop.f32.mrf.mxu0
    %v917 = vadd.f32 %v891, %v916
    %918 = vdwg.mxu0
    %v919 = vmul.f32 %v911, 0.5
    %v920 = vmul.f32 %v914, 0.5
    %v921 = vmul.f32 %v917, 0.5
    %v922 = vmul.f32 %v911, 0.70710677
    %v923 = vmul.f32 %v914, 0.70710677
    %v924 = vmul.f32 %v917, 0.70710677
    %v925 = vmul.f32 %v922, %v922
    %v926 = vmin.f32 16.0, %v925
    %v927 = vmul.f32 %v926, 2.1237322e-06
    %v928 = vadd.f32 %v927, 0.00028619796
    %v929 = vmul.f32 %v926, %v928
    %v930 = vadd.f32 %v929, 0.0036580483
    %v931 = vmul.f32 %v926, %v930
    %v932 = vadd.f32 %v931, 0.05243302
    %v933 = vmul.f32 %v926, %v932
    %v934 = vadd.f32 %v933, 0.18741608
    %v935 = vmul.f32 %v926, %v934
    %v936 = vadd.f32 %v935, 1.1283791
    %v937 = vmul.f32 %v922, %v936
    %v938 = vmul.f32 %v926, 3.8918573e-05
    %v939 = vadd.f32 %v938, 0.001143296
    %v940 = vmul.f32 %v926, %v939
    %v941 = vadd.f32 %v940, 0.014752088
    %v942 = vmul.f32 %v926, %v941
    %v943 = vadd.f32 %v942, 0.112945676
    %v944 = vmul.f32 %v926, %v943
    %v945 = vadd.f32 %v944, 0.4994258
    %v946 = vmul.f32 %v926, %v945
    %v947 = vadd.f32 %v946, 1.0
    %v948 = vrcp.pop %v947
    %v949 = vmul.f32 %v947, %v948
    %v950 = vsub.f32 1.0, %v949
    %v951 = vmul.f32 %v948, %v950
    %v952 = vadd.f32 %v948, %v951
    %vm953 = vweird.f32 %v947
    %vm954 = vweird.f32 %v948
    %vm955 = vmor %vm953, %vm954
    %v956 = vsel %vm955, %v948, %v952
    %v957 = vand.u32 2147483647, %v947
    %vm958 = vcmp.eq.f32.partialorder %v957, 8.507059e+37
    %v959 = vand.u32 %v947, 2147483648
    %v960 = vor.u32 1.1754944e-38, %v959
    %v961 = vsel %vm958, %v960, %v956
    %v962 = vmul.f32 %v937, %v961
    %v963 = vmin.f32 %v962, 1.0
    %v964 = vmax.f32 %v963, -1.0
    %v965 = vmul.f32 %v923, %v923
    %v966 = vmin.f32 16.0, %v965
    %v967 = vmul.f32 %v966, 2.1237322e-06
    %v968 = vadd.f32 %v967, 0.00028619796
    %v969 = vmul.f32 %v966, %v968
    %v970 = vadd.f32 %v969, 0.0036580483
    %v971 = vmul.f32 %v966, %v970
    %v972 = vadd.f32 %v971, 0.05243302
    %v973 = vmul.f32 %v966, %v972
    %v974 = vadd.f32 %v973, 0.18741608
    %v975 = vmul.f32 %v966, %v974
    %v976 = vadd.f32 %v975, 1.1283791
    %v977 = vmul.f32 %v923, %v976
    %v978 = vmul.f32 %v966, 3.8918573e-05
    %v979 = vadd.f32 %v978, 0.001143296
    %v980 = vmul.f32 %v966, %v979
    %v981 = vadd.f32 %v980, 0.014752088
    %v982 = vmul.f32 %v966, %v981
    %v983 = vadd.f32 %v982, 0.112945676
    %v984 = vmul.f32 %v966, %v983
    %v985 = vadd.f32 %v984, 0.4994258
    %v986 = vmul.f32 %v966, %v985
    %v987 = vadd.f32 %v986, 1.0
    %v988 = vrcp.pop %v987
    %v989 = vmul.f32 %v987, %v988
    %v990 = vsub.f32 1.0, %v989
    %v991 = vmul.f32 %v988, %v990
    %v992 = vadd.f32 %v988, %v991
    %vm993 = vweird.f32 %v987
    %vm994 = vweird.f32 %v988
    %vm995 = vmor %vm993, %vm994
    %v996 = vsel %vm995, %v988, %v992
    %v997 = vand.u32 2147483647, %v987
    %vm998 = vcmp.eq.f32.partialorder %v997, 8.507059e+37
    %v999 = vand.u32 %v987, 2147483648
    %v1000 = vor.u32 1.1754944e-38, %v999
    %v1001 = vsel %vm998, %v1000, %v996
    %v1002 = vmul.f32 %v977, %v1001
    %v1003 = vmin.f32 %v1002, 1.0
    %v1004 = vmax.f32 %v1003, -1.0
    %v1005 = vmul.f32 %v924, %v924
    %v1006 = vmin.f32 16.0, %v1005
    %v1007 = vmul.f32 %v1006, 2.1237322e-06
    %v1008 = vadd.f32 %v1007, 0.00028619796
    %v1009 = vmul.f32 %v1006, %v1008
    %v1010 = vadd.f32 %v1009, 0.0036580483
    %v1011 = vmul.f32 %v1006, %v1010
    %v1012 = vadd.f32 %v1011, 0.05243302
    %v1013 = vmul.f32 %v1006, %v1012
    %v1014 = vadd.f32 %v1013, 0.18741608
    %v1015 = vmul.f32 %v1006, %v1014
    %v1016 = vadd.f32 %v1015, 1.1283791
    %v1017 = vmul.f32 %v924, %v1016
    %v1018 = vmul.f32 %v1006, 3.8918573e-05
    %v1019 = vadd.f32 %v1018, 0.001143296
    %v1020 = vmul.f32 %v1006, %v1019
    %v1021 = vadd.f32 %v1020, 0.014752088
    %v1022 = vmul.f32 %v1006, %v1021
    %v1023 = vadd.f32 %v1022, 0.112945676
    %v1024 = vmul.f32 %v1006, %v1023
    %v1025 = vadd.f32 %v1024, 0.4994258
    %v1026 = vmul.f32 %v1006, %v1025
    %v1027 = vadd.f32 %v1026, 1.0
    %v1028 = vrcp.pop %v1027
    %v1029 = vmul.f32 %v1027, %v1028
    %v1030 = vsub.f32 1.0, %v1029
    %v1031 = vmul.f32 %v1028, %v1030
    %v1032 = vadd.f32 %v1028, %v1031
    %vm1033 = vweird.f32 %v1027
    %vm1034 = vweird.f32 %v1028
    %vm1035 = vmor %vm1033, %vm1034
    %v1036 = vsel %vm1035, %v1028, %v1032
    %v1037 = vand.u32 2147483647, %v1027
    %vm1038 = vcmp.eq.f32.partialorder %v1037, 8.507059e+37
    %v1039 = vand.u32 %v1027, 2147483648
    %v1040 = vor.u32 1.1754944e-38, %v1039
    %v1041 = vsel %vm1038, %v1040, %v1036
    %v1042 = vmul.f32 %v1017, %v1041
    %v1043 = vmin.f32 %v1042, 1.0
    %v1044 = vmax.f32 %v1043, -1.0
    %v1045 = vadd.f32 %v964, 1.0
    %v1046 = vadd.f32 %v1004, 1.0
    %v1047 = vadd.f32 %v1044, 1.0
    %v1048 = vmul.f32 %v919, %v1045
    %v1049 = vmul.f32 %v920, %v1046
    %v1050 = vmul.f32 %v921, %v1047
    %v1051 = vld [vmem:[#allocation13] sm:$0xff]
    %v1052 = vld [vmem:[#allocation13 + $0x8] sm:$0xff]
    %v1053 = vld [vmem:[#allocation13 + $0x10] sm:$0xff]
    %v1054 = vld [vmem:[#allocation13 + $0x18] sm:$0xff]
    %v1055 = vld [vmem:[#allocation13 + $0x20] sm:$0xff]
    %v1056 = vld [vmem:[#allocation13 + $0x28] sm:$0xff]
    %v1057 = vld [vmem:[#allocation13 + $0x30] sm:$0xff]
    %v1058 = vld [vmem:[#allocation13 + $0x38] sm:$0xff]
    %v1059 = vld [vmem:[#allocation13 + $0x40] sm:$0xff]
    %v1060 = vld [vmem:[#allocation13 + $0x48] sm:$0xff]
    %v1061 = vld [vmem:[#allocation13 + $0x50] sm:$0xff]
    %v1062 = vld [vmem:[#allocation13 + $0x58] sm:$0xff]
    %v1063 = vld [vmem:[#allocation13 + $0x60] sm:$0xff]
    %v1064 = vld [vmem:[#allocation13 + $0x68] sm:$0xff]
    %v1065 = vld [vmem:[#allocation13 + $0x70] sm:$0xff]
    %v1066 = vld [vmem:[#allocation13 + $0x78] sm:$0xff]
    %v1067 = vperm.slane %v142, 3
    %1068 = vmatpush.msra.mxu0 %v1066
    %1069 = vmatpush.msra.mxu0 %v1065
    %1070 = vmatpush.msra.mxu0 %v1064
    %1071 = vmatpush.msra.mxu0 %v1063
    %1072 = vmatpush.msra.mxu0 %v1062
    %1073 = vmatpush.msra.mxu0 %v1061
    %1074 = vmatpush.msra.mxu0 %v1060
    %1075 = vmatpush.msra.mxu0 %v1059
    %1076 = vmatpush.msra.mxu0 %v1058
    %1077 = vmatpush.msra.mxu0 %v1057
    %1078 = vmatpush.msra.mxu0 %v1056
    %1079 = vmatpush.msra.mxu0 %v1055
    %1080 = vmatpush.msra.mxu0 %v1054
    %1081 = vmatpush.msra.mxu0 %v1053
    %1082 = vmatpush.msra.mxu0 %v1052
    %1083 = vmatpush.msra.mxu0 %v1051
    %1084 = vmatmul.f32.gmra.mxu0 %v1048
    %v1085 = vpop.f32.mrf.mxu0
    %v1086 = vadd.f32 %v1067, %v1085
    %1087 = vmatmul.f32.gmra.mxu0 %v1049
    %v1088 = vpop.f32.mrf.mxu0
    %v1089 = vadd.f32 %v1067, %v1088
    %1090 = vmatmul.f32.gmra.mxu0 %v1050
    %v1091 = vpop.f32.mrf.mxu0
    %v1092 = vadd.f32 %v1067, %v1091
    %1093 = vdwg.mxu0
    %v1094 = vxor.u32 %v1086, 2147483648
    %v1095 = vxor.u32 %v1089, 2147483648
    %v1096 = vxor.u32 %v1092, 2147483648
    %v1097 = vmul.f32 %v1094, 1.442695
    %v1098 = vpow.pop %v1097
    %v1099 = vmul.f32 %v1095, 1.442695
    %v1100 = vpow.pop %v1099
    %v1101 = vmul.f32 %v1096, 1.442695
    %v1102 = vpow.pop %v1101
    %v1103 = vadd.f32 %v1098, 1.0
    %v1104 = vadd.f32 %v1100, 1.0
    %v1105 = vadd.f32 %v1102, 1.0
    %v1106 = vrcp.pop %v1103
    %v1107 = vmul.f32 %v1103, %v1106
    %v1108 = vsub.f32 1.0, %v1107
    %v1109 = vmul.f32 %v1106, %v1108
    %v1110 = vadd.f32 %v1106, %v1109
    %vm1111 = vweird.f32 %v1103
    %vm1112 = vweird.f32 %v1106
    %vm1113 = vmor %vm1111, %vm1112
    %v1114 = vsel %vm1113, %v1106, %v1110
    %v1115 = vand.u32 2147483647, %v1103
    %vm1116 = vcmp.eq.f32.partialorder %v1115, 8.507059e+37
    %v1117 = vand.u32 %v1103, 2147483648
    %v1118 = vor.u32 1.1754944e-38, %v1117
    %v1119 = vsel %vm1116, %v1118, %v1114
    %v1120 = vmul.f32 1.0, %v1119
    %v1121 = vrcp.pop %v1104
    %v1122 = vmul.f32 %v1104, %v1121
    %v1123 = vsub.f32 1.0, %v1122
    %v1124 = vmul.f32 %v1121, %v1123
    %v1125 = vadd.f32 %v1121, %v1124
    %vm1126 = vweird.f32 %v1104
    %vm1127 = vweird.f32 %v1121
    %vm1128 = vmor %vm1126, %vm1127
    %v1129 = vsel %vm1128, %v1121, %v1125
    %v1130 = vand.u32 2147483647, %v1104
    %vm1131 = vcmp.eq.f32.partialorder %v1130, 8.507059e+37
    %v1132 = vand.u32 %v1104, 2147483648
    %v1133 = vor.u32 1.1754944e-38, %v1132
    %v1134 = vsel %vm1131, %v1133, %v1129
    %v1135 = vmul.f32 1.0, %v1134
    %v1136 = vrcp.pop %v1105
    %v1137 = vmul.f32 %v1105, %v1136
    %v1138 = vsub.f32 1.0, %v1137
    %v1139 = vmul.f32 %v1136, %v1138
    %v1140 = vadd.f32 %v1136, %v1139
    %vm1141 = vweird.f32 %v1105
    %vm1142 = vweird.f32 %v1136
    %vm1143 = vmor %vm1141, %vm1142
    %v1144 = vsel %vm1143, %v1136, %v1140
    %v1145 = vand.u32 2147483647, %v1105
    %vm1146 = vcmp.eq.f32.partialorder %v1145, 8.507059e+37
    %v1147 = vand.u32 %v1105, 2147483648
    %v1148 = vor.u32 1.1754944e-38, %v1147
    %v1149 = vsel %vm1146, %v1148, %v1144
    %v1150 = vmul.f32 1.0, %v1149
    %v1151 = vmul.f32 %v870, %v1120
    %v1152 = vmul.f32 %v871, %v1135
    %v1153 = vmul.f32 %v872, %v1150
    %1154 = vst [vmem:[#allocation14] sm:$0xff] %v1151
    %1155 = vst [vmem:[#allocation14 + $0x8] sm:$0xff] %v1152
    %1156 = vst [vmem:[#allocation14 + $0x10] sm:$0xf] %v1153
    // Predicated region
    $region62: #{tpu_custom_call.1} parent=1 // pred_check
      _
    $region63: #{tpu_custom_call.1} parent=1 // pred_check_branch
      %1158 = sbr.rel (0) target = $region65
    $region64: #{tpu_custom_call.1} parent=1 // pred_region
      %1160 = vsyncadd [#allocation4], 0
      %s1161 = sshll.u32 [#allocation14], 4
      %s1162 = int_to_ptr.vmem [resolvable:$true] %s1161
      %s1163 = sshll.u32 %s8, 4
      %s1164 = int_to_ptr.hbm [resolvable:$true] %s1163
      %1169 = dma.vmem_to_hbm [thread:$0]  %s1162, 384, %s1164, [#allocation4], 128, 128, 8
    $region65: #{tpu_custom_call.1} parent=1 // pred_fallthru
      _
    // Predicated region
    $region66: #{tpu_custom_call.1} parent=1 // pred_check
      _
    $region67: #{tpu_custom_call.1} parent=1 // pred_check_branch
      %1171 = sbr.rel (0) target = $region69
    $region68: #{tpu_custom_call.1} parent=1 // pred_region
      %1173 = dma.done [#allocation4], 384
    $region69: #{tpu_custom_call.1} parent=1 // pred_fallthru
      _
    %1174 = vsyncpa [#allocation3], 1
    %1175 = vsyncpa [#allocation6], 1
    %1176 = vsyncpa [#allocation9], 1
    %1177 = vsyncpa [#allocation12], 1
    %1178 = vsyncpa [#allocation4], 1

</llo_original>
